<compile_context>
chip_gen: v6e
topology: v6e:2x2x1
jax: 0.10.0
libtpu: 0.0.40
codegen_flags: <defaults>
</compile_context>

<pallas_src>
import functools

import jax
import jax.numpy as jnp
from jax import lax
from jax.experimental import pallas as pl
from jax.experimental.pallas import tpu as pltpu


# ----------------------------------------------------------------------------
# helpers
# ----------------------------------------------------------------------------

def _round_up(x, m):
    return ((x + m - 1) // m) * m


_GRID_STEP_ROW_COST = 8   # per-grid-step overhead expressed in "rows of work"


def _pick_row_tile(M, block_m):
    """Row tile: multiple of 16 (bf16 packs 16 sublanes/vreg), balancing
    padded-row waste against per-grid-step overhead, and preferring >= 2 row
    blocks so the 'parallel' axis can be split across TensorCores (v7x)."""
    cap = max(16, min(_round_up(block_m, 16), _round_up(M, 16)))
    best_key, best = None, None
    for tm in range(16, cap + 1, 16):
        mp = _round_up(M, tm)
        nblk = mp // tm
        key = (0 if (nblk >= 2 or M <= 16) else 1,     # want >=2 blocks
               mp + nblk * _GRID_STEP_ROW_COST,        # waste + step overhead
               -tm)                                    # then bigger tiles
        if best_key is None or key < best_key:
            best_key, best = key, (tm, mp)
    return best


# ----------------------------------------------------------------------------
# Kernels
# ----------------------------------------------------------------------------

def _mapping_fused_kernel(x_ref, w_ref, b_ref, o_ref):
    """All L layers for one (tm, Dp) block of rows.

    x_ref: (tm, Dp) f32   w_ref: (L, Dp, Dp) bf16 (VMEM resident, 1 buffer)
    b_ref: (L, 1, Dp) f32 o_ref: (tm, Dp) f32
    Activation carried in bf16 between layers; MXU accumulates in f32.
    """
    num_layers = w_ref.shape[0]
    carry_dtype = w_ref.dtype
    h = x_ref[...].astype(carry_dtype)

    def layer(l, h):
        y = jnp.dot(h, w_ref[l], preferred_element_type=jnp.float32) + b_ref[l]
        return y.astype(carry_dtype)

    if num_layers <= 8:                        # static unroll for small L
        for l in range(num_layers - 1):
            h = layer(l, h)
    else:                                      # compact codegen for large L
        h = lax.fori_loop(0, num_layers - 1, layer, h, unroll=2)

    # Last layer: keep the f32 accumulator for the f32 output tile.
    o_ref[...] = (jnp.dot(h, w_ref[num_layers - 1],
                          preferred_element_type=jnp.float32)
                  + b_ref[num_layers - 1])


def _mapping_stream_kernel(x_ref, w_ref, b_ref, o_ref, h_ref):
    """Layer-streaming variant: grid = (row_blocks, L), layer axis innermost.

    Only one layer's weights (double-buffered) live in VMEM; the activation
    is carried across layer steps in a bf16 VMEM scratch (h_ref); the output
    tile is written once at the last layer.
    """
    l = pl.program_id(1)

    @pl.when(l == 0)
    def _():
        h_ref[...] = x_ref[...].astype(h_ref.dtype)

    y = (jnp.dot(h_ref[...], w_ref[0], preferred_element_type=jnp.float32)
         + b_ref[0])
    h_ref[...] = y.astype(h_ref.dtype)

    @pl.when(l == pl.num_programs(1) - 1)
    def _():
        o_ref[...] = y


# ----------------------------------------------------------------------------
# Parameter preparation (once, outside the per-call hot path)
# ----------------------------------------------------------------------------

def prepare_mapping_params(weights, biases, *, mxu_dtype=jnp.bfloat16):
    """Pad feature dim to a lane-dense multiple of 128 and cast weights to
    the MXU input dtype once.  Zero-padded rows/cols keep padded lanes
    exactly 0 through every layer, so the final slice is exact."""
    L, D, D2 = weights.shape
    assert D == D2 and biases.shape == (L, D)
    Dp = _round_up(max(D, 128), 128)
    if D == Dp:                                # skip redundant padding copies
        w_p = weights.astype(mxu_dtype)
        b_p = biases.astype(jnp.float32)[:, None, :]
    else:
        w_p = jnp.zeros((L, Dp, Dp), mxu_dtype).at[:, :D, :D].set(
            weights.astype(mxu_dtype))
        b_p = jnp.zeros((L, 1, Dp), jnp.float32).at[:, 0, :D].set(
            biases.astype(jnp.float32))
    return w_p, b_p, D


# ----------------------------------------------------------------------------
# Forward pass
# ----------------------------------------------------------------------------

def mapping_forward_prepared(x, w_p, b_p, *, d_out, block_m=256,
                             max_resident_weight_bytes=24 << 20):
    """x: (M, d_out) f32; w_p/b_p from prepare_mapping_params."""
    M, D = x.shape
    L, Dp, _ = w_p.shape
    assert D == d_out and Dp >= D

    tm, Mp = _pick_row_tile(M, block_m)
    grid_rows = Mp // tm

    if (M, D) == (Mp, Dp):                     # skip redundant padding copies
        x_p = x.astype(jnp.float32)
    else:
        x_p = jnp.zeros((Mp, Dp), jnp.float32).at[:M, :D].set(
            x.astype(jnp.float32))

    w_bytes = L * Dp * Dp * w_p.dtype.itemsize
    b_bytes = L * Dp * 4
    io_tile_bytes = tm * Dp * 4
    flops = 2 * Mp * Dp * Dp * L

    use_streaming = w_bytes > max_resident_weight_bytes

    if not use_streaming:
        # ---- fused: all layers VMEM-resident, grid over row blocks only ----
        vmem_need = (w_bytes + b_bytes                     # 1-buffer residents
                     + 4 * io_tile_bytes                   # x & out, 2 bufs ea
                     + tm * Dp * w_p.dtype.itemsize)       # bf16 carry
        vmem_limit = int(min(max(1.3 * vmem_need + (2 << 20), 32 << 20),
                             64 << 20))
        out = pl.pallas_call(
            _mapping_fused_kernel,
            out_shape=jax.ShapeDtypeStruct((Mp, Dp), jnp.float32),
            grid_spec=pltpu.PrefetchScalarGridSpec(
                num_scalar_prefetch=0,
                grid=(grid_rows,),
                in_specs=[
                    pl.BlockSpec((tm, Dp), lambda i: (i, 0)),
                    # Constant index_map -> DMA'd once; single buffer avoids a
                    # useless second copy of the largest VMEM allocation.
                    pl.BlockSpec((L, Dp, Dp), lambda i: (0, 0, 0),
                                 pipeline_mode=pl.Buffered(1)),
                    pl.BlockSpec((L, 1, Dp), lambda i: (0, 0, 0),
                                 pipeline_mode=pl.Buffered(1)),
                ],
                out_specs=pl.BlockSpec((tm, Dp), lambda i: (i, 0)),
            ),
            compiler_params=pltpu.CompilerParams(
                dimension_semantics=("parallel",),
                vmem_limit_bytes=vmem_limit),
            cost_estimate=pl.CostEstimate(
                flops=flops, transcendentals=0,
                bytes_accessed=x_p.size * 4 + w_bytes + b_bytes + Mp * Dp * 4),
        )(x_p, w_p, b_p)
    else:
        # ---- streaming: grid=(rows, L), one layer's weights at a time ------
        # TODO(synk): could additionally tile Dp for latent dims too large for
        # two per-layer weight buffers; unnecessary for this module's sizes.
        per_layer_w = Dp * Dp * w_p.dtype.itemsize
        vmem_need = (2 * per_layer_w + 2 * Dp * 4          # dbl-buffered layer
                     + 4 * io_tile_bytes                   # x & out tiles
                     + tm * Dp * w_p.dtype.itemsize)       # bf16 h scratch
        vmem_limit = int(min(max(1.3 * vmem_need + (2 << 20), 32 << 20),
                             64 << 20))
        out = pl.pallas_call(
            _mapping_stream_kernel,
            out_shape=jax.ShapeDtypeStruct((Mp, Dp), jnp.float32),
            grid_spec=pltpu.PrefetchScalarGridSpec(
                num_scalar_prefetch=0,
                grid=(grid_rows, L),
                in_specs=[
                    pl.BlockSpec((tm, Dp), lambda i, l: (i, 0)),
                    pl.BlockSpec((1, Dp, Dp), lambda i, l: (l, 0, 0)),
                    pl.BlockSpec((1, 1, Dp), lambda i, l: (l, 0, 0)),
                ],
                out_specs=pl.BlockSpec((tm, Dp), lambda i, l: (i, 0)),
                scratch_shapes=[pltpu.VMEM((tm, Dp), w_p.dtype)],
            ),
            compiler_params=pltpu.CompilerParams(
                dimension_semantics=("parallel", "arbitrary"),
                vmem_limit_bytes=vmem_limit),
            cost_estimate=pl.CostEstimate(
                flops=flops, transcendentals=0,
                bytes_accessed=(x_p.size * 4
                                + grid_rows * (w_bytes + b_bytes)
                                + Mp * Dp * 4)),
        )(x_p, w_p, b_p)

    if (M, D) == (Mp, Dp):
        return out
    return out[:M, :D]


def mapping_forward(x, weights, biases, *, block_m=256,
                    mxu_dtype=jnp.bfloat16,
                    max_resident_weight_bytes=24 << 20):
    """Convenience wrapper: weights (L, D, D) stored as (in, out) -- i.e. the
    transpose of torch.nn.Linear.weight for each layer; biases (L, D)."""
    w_p, b_p, D = prepare_mapping_params(weights, biases, mxu_dtype=mxu_dtype)
    return mapping_forward_prepared(
        x, w_p, b_p, d_out=D, block_m=block_m,
        max_resident_weight_bytes=max_resident_weight_bytes)


# ----------------------------------------------------------------------------
# Parameters (deterministic, PyTorch-default-style nn.Linear init)
# ----------------------------------------------------------------------------

def init_mapping_params(key, num_layers, latent_dim):
    kw, kb = jax.random.split(key)
    lim = 1.0 / (latent_dim ** 0.5)
    w = jax.random.uniform(kw, (num_layers, latent_dim, latent_dim),
                           jnp.float32, -lim, lim)
    b = jax.random.uniform(kb, (num_layers, latent_dim), jnp.float32,
                           -lim, lim)
    return w, b


# ----------------------------------------------------------------------------

if __name__ == "__main__":

    def run_case(batch, latent_dim, num_layers, block_m,
                 max_resident_weight_bytes=24 << 20):
        kx, kp = jax.random.split(jax.random.PRNGKey(0))
        x = jax.random.normal(kx, (batch, latent_dim), jnp.float32)
        w, b = init_mapping_params(kp, num_layers, latent_dim)

        # Parameter padding/casting happens ONCE, outside the jitted hot path.
        w_p, b_p, D = prepare_mapping_params(w, b)
        fwd = jax.jit(functools.partial(
            mapping_forward_prepared, d_out=D, block_m=block_m,
            max_resident_weight_bytes=max_resident_weight_bytes))
        y = jax.block_until_ready(fwd(x, w_p, b_p))

        assert y.shape == (batch, latent_dim), y.shape
        assert bool(jnp.all(jnp.isfinite(y)))

        # bf16-emulating reference (same quantization points as the kernel)
        # plus a loose check against the pure-f32 PyTorch-style reference.
        hi = jax.lax.Precision.HIGHEST
        ref16, ref32 = x, x
        for l in range(num_layers):
            q = ref16.astype(jnp.bfloat16).astype(jnp.float32)
            wq = w[l].astype(jnp.bfloat16).astype(jnp.float32)
            ref16 = jnp.matmul(q, wq, precision=hi) + b[l]
            ref32 = jnp.matmul(ref32, w[l], precision=hi) + b[l]
        assert bool(jnp.allclose(y, ref16, rtol=2e-2, atol=2e-3)), \
            float(jnp.max(jnp.abs(y - ref16)))
        assert bool(jnp.allclose(y, ref32, rtol=1e-1, atol=1e-2)), \
            float(jnp.max(jnp.abs(y - ref32)))

    # fused path: lane-dense D=256, static unroll, tiny batch
    run_case(batch=8, latent_dim=256, num_layers=8, block_m=128)
    # fused path: exercises padding (96 -> 128 lanes, 130 -> 144 rows), 3 blocks
    run_case(batch=130, latent_dim=96, num_layers=3, block_m=64)
    # fused path: L > 8 -> fori_loop body, >= 2 row blocks (megacore-friendly)
    run_case(batch=32, latent_dim=128, num_layers=10, block_m=128)
    # layer-streaming path (forced via a zero residency budget)
    run_case(batch=64, latent_dim=128, num_layers=4, block_m=128,
             max_resident_weight_bytes=0)

    print("KERNEL_OK")
</pallas_src>

<mosaic_0001>
module attributes {stable_mosaic.version = 11 : i64} {
  func.func @_mapping_fused_kernel(%arg0: i32, %arg1: memref<16x256xf32, #tpu.memory_space<vmem>>, %arg2: memref<8x256x256xbf16, #tpu.memory_space<vmem>>, %arg3: memref<8x1x256xf32, #tpu.memory_space<vmem>>, %arg4: memref<16x256xf32, #tpu.memory_space<vmem>>) attributes {dimension_semantics = [#tpu.dimension_semantics<parallel>], iteration_bounds = array<i64: 1>, scalar_prefetch = 0 : i64, scratch_operands = 0 : i64, tpu.core_type = #tpu.core_type<tc>, window_params = [{transform_indices = @transform_0, window_bounds = array<i64: 16, 256>}, {pipeline_mode = #tpu.pipeline_mode<synchronous>, transform_indices = @transform_1, window_bounds = array<i64: 8, 256, 256>}, {pipeline_mode = #tpu.pipeline_mode<synchronous>, transform_indices = @transform_2, window_bounds = array<i64: 8, 1, 256>}, {transform_indices = @transform_3, window_bounds = array<i64: 16, 256>}]} {
    %c0 = arith.constant 0 : index
    %c0_0 = arith.constant 0 : index
    %0 = vector.load %arg1[%c0, %c0_0] : memref<16x256xf32, #tpu.memory_space<vmem>>, vector<16x256xf32>
    %1 = arith.truncf %0 : vector<16x256xf32> to vector<16x256xbf16>
    %c0_1 = arith.constant 0 : index
    %c0_2 = arith.constant 0 : index
    %c0_3 = arith.constant 0 : index
    %2 = vector.load %arg2[%c0_1, %c0_2, %c0_3] : memref<8x256x256xbf16, #tpu.memory_space<vmem>>, vector<1x256x256xbf16>
    %3 = vector.shape_cast %2 : vector<1x256x256xbf16> to vector<256x256xbf16>
    %cst = arith.constant dense<0.000000e+00> : vector<16x256xf32>
    %4 = tpu.matmul %1, %3, %cst {dimension_numbers = #tpu.dot_dimension_numbers<[1], [0], [0], [1], [0, 0, 1, 1], [], []>} : vector<16x256xbf16>, vector<256x256xbf16>, vector<16x256xf32> -> vector<16x256xf32>
    %c0_4 = arith.constant 0 : index
    %c0_5 = arith.constant 0 : index
    %c0_6 = arith.constant 0 : index
    %5 = vector.load %arg3[%c0_4, %c0_5, %c0_6] : memref<8x1x256xf32, #tpu.memory_space<vmem>>, vector<1x1x256xf32>
    %6 = vector.shape_cast %5 : vector<1x1x256xf32> to vector<1x256xf32>
    %7 = vector.broadcast %6 : vector<1x256xf32> to vector<16x256xf32>
    %8 = arith.addf %4, %7 : vector<16x256xf32>
    %9 = arith.truncf %8 : vector<16x256xf32> to vector<16x256xbf16>
    %c1 = arith.constant 1 : index
    %c0_7 = arith.constant 0 : index
    %c0_8 = arith.constant 0 : index
    %10 = vector.load %arg2[%c1, %c0_7, %c0_8] : memref<8x256x256xbf16, #tpu.memory_space<vmem>>, vector<1x256x256xbf16>
    %11 = vector.shape_cast %10 : vector<1x256x256xbf16> to vector<256x256xbf16>
    %cst_9 = arith.constant dense<0.000000e+00> : vector<16x256xf32>
    %12 = tpu.matmul %9, %11, %cst_9 {dimension_numbers = #tpu.dot_dimension_numbers<[1], [0], [0], [1], [0, 0, 1, 1], [], []>} : vector<16x256xbf16>, vector<256x256xbf16>, vector<16x256xf32> -> vector<16x256xf32>
    %c1_10 = arith.constant 1 : index
    %c0_11 = arith.constant 0 : index
    %c0_12 = arith.constant 0 : index
    %13 = vector.load %arg3[%c1_10, %c0_11, %c0_12] : memref<8x1x256xf32, #tpu.memory_space<vmem>>, vector<1x1x256xf32>
    %14 = vector.shape_cast %13 : vector<1x1x256xf32> to vector<1x256xf32>
    %15 = vector.broadcast %14 : vector<1x256xf32> to vector<16x256xf32>
    %16 = arith.addf %12, %15 : vector<16x256xf32>
    %17 = arith.truncf %16 : vector<16x256xf32> to vector<16x256xbf16>
    %c2 = arith.constant 2 : index
    %c0_13 = arith.constant 0 : index
    %c0_14 = arith.constant 0 : index
    %18 = vector.load %arg2[%c2, %c0_13, %c0_14] : memref<8x256x256xbf16, #tpu.memory_space<vmem>>, vector<1x256x256xbf16>
    %19 = vector.shape_cast %18 : vector<1x256x256xbf16> to vector<256x256xbf16>
    %cst_15 = arith.constant dense<0.000000e+00> : vector<16x256xf32>
    %20 = tpu.matmul %17, %19, %cst_15 {dimension_numbers = #tpu.dot_dimension_numbers<[1], [0], [0], [1], [0, 0, 1, 1], [], []>} : vector<16x256xbf16>, vector<256x256xbf16>, vector<16x256xf32> -> vector<16x256xf32>
    %c2_16 = arith.constant 2 : index
    %c0_17 = arith.constant 0 : index
    %c0_18 = arith.constant 0 : index
    %21 = vector.load %arg3[%c2_16, %c0_17, %c0_18] : memref<8x1x256xf32, #tpu.memory_space<vmem>>, vector<1x1x256xf32>
    %22 = vector.shape_cast %21 : vector<1x1x256xf32> to vector<1x256xf32>
    %23 = vector.broadcast %22 : vector<1x256xf32> to vector<16x256xf32>
    %24 = arith.addf %20, %23 : vector<16x256xf32>
    %25 = arith.truncf %24 : vector<16x256xf32> to vector<16x256xbf16>
    %c3 = arith.constant 3 : index
    %c0_19 = arith.constant 0 : index
    %c0_20 = arith.constant 0 : index
    %26 = vector.load %arg2[%c3, %c0_19, %c0_20] : memref<8x256x256xbf16, #tpu.memory_space<vmem>>, vector<1x256x256xbf16>
    %27 = vector.shape_cast %26 : vector<1x256x256xbf16> to vector<256x256xbf16>
    %cst_21 = arith.constant dense<0.000000e+00> : vector<16x256xf32>
    %28 = tpu.matmul %25, %27, %cst_21 {dimension_numbers = #tpu.dot_dimension_numbers<[1], [0], [0], [1], [0, 0, 1, 1], [], []>} : vector<16x256xbf16>, vector<256x256xbf16>, vector<16x256xf32> -> vector<16x256xf32>
    %c3_22 = arith.constant 3 : index
    %c0_23 = arith.constant 0 : index
    %c0_24 = arith.constant 0 : index
    %29 = vector.load %arg3[%c3_22, %c0_23, %c0_24] : memref<8x1x256xf32, #tpu.memory_space<vmem>>, vector<1x1x256xf32>
    %30 = vector.shape_cast %29 : vector<1x1x256xf32> to vector<1x256xf32>
    %31 = vector.broadcast %30 : vector<1x256xf32> to vector<16x256xf32>
    %32 = arith.addf %28, %31 : vector<16x256xf32>
    %33 = arith.truncf %32 : vector<16x256xf32> to vector<16x256xbf16>
    %c4 = arith.constant 4 : index
    %c0_25 = arith.constant 0 : index
    %c0_26 = arith.constant 0 : index
    %34 = vector.load %arg2[%c4, %c0_25, %c0_26] : memref<8x256x256xbf16, #tpu.memory_space<vmem>>, vector<1x256x256xbf16>
    %35 = vector.shape_cast %34 : vector<1x256x256xbf16> to vector<256x256xbf16>
    %cst_27 = arith.constant dense<0.000000e+00> : vector<16x256xf32>
    %36 = tpu.matmul %33, %35, %cst_27 {dimension_numbers = #tpu.dot_dimension_numbers<[1], [0], [0], [1], [0, 0, 1, 1], [], []>} : vector<16x256xbf16>, vector<256x256xbf16>, vector<16x256xf32> -> vector<16x256xf32>
    %c4_28 = arith.constant 4 : index
    %c0_29 = arith.constant 0 : index
    %c0_30 = arith.constant 0 : index
    %37 = vector.load %arg3[%c4_28, %c0_29, %c0_30] : memref<8x1x256xf32, #tpu.memory_space<vmem>>, vector<1x1x256xf32>
    %38 = vector.shape_cast %37 : vector<1x1x256xf32> to vector<1x256xf32>
    %39 = vector.broadcast %38 : vector<1x256xf32> to vector<16x256xf32>
    %40 = arith.addf %36, %39 : vector<16x256xf32>
    %41 = arith.truncf %40 : vector<16x256xf32> to vector<16x256xbf16>
    %c5 = arith.constant 5 : index
    %c0_31 = arith.constant 0 : index
    %c0_32 = arith.constant 0 : index
    %42 = vector.load %arg2[%c5, %c0_31, %c0_32] : memref<8x256x256xbf16, #tpu.memory_space<vmem>>, vector<1x256x256xbf16>
    %43 = vector.shape_cast %42 : vector<1x256x256xbf16> to vector<256x256xbf16>
    %cst_33 = arith.constant dense<0.000000e+00> : vector<16x256xf32>
    %44 = tpu.matmul %41, %43, %cst_33 {dimension_numbers = #tpu.dot_dimension_numbers<[1], [0], [0], [1], [0, 0, 1, 1], [], []>} : vector<16x256xbf16>, vector<256x256xbf16>, vector<16x256xf32> -> vector<16x256xf32>
    %c5_34 = arith.constant 5 : index
    %c0_35 = arith.constant 0 : index
    %c0_36 = arith.constant 0 : index
    %45 = vector.load %arg3[%c5_34, %c0_35, %c0_36] : memref<8x1x256xf32, #tpu.memory_space<vmem>>, vector<1x1x256xf32>
    %46 = vector.shape_cast %45 : vector<1x1x256xf32> to vector<1x256xf32>
    %47 = vector.broadcast %46 : vector<1x256xf32> to vector<16x256xf32>
    %48 = arith.addf %44, %47 : vector<16x256xf32>
    %49 = arith.truncf %48 : vector<16x256xf32> to vector<16x256xbf16>
    %c6 = arith.constant 6 : index
    %c0_37 = arith.constant 0 : index
    %c0_38 = arith.constant 0 : index
    %50 = vector.load %arg2[%c6, %c0_37, %c0_38] : memref<8x256x256xbf16, #tpu.memory_space<vmem>>, vector<1x256x256xbf16>
    %51 = vector.shape_cast %50 : vector<1x256x256xbf16> to vector<256x256xbf16>
    %cst_39 = arith.constant dense<0.000000e+00> : vector<16x256xf32>
    %52 = tpu.matmul %49, %51, %cst_39 {dimension_numbers = #tpu.dot_dimension_numbers<[1], [0], [0], [1], [0, 0, 1, 1], [], []>} : vector<16x256xbf16>, vector<256x256xbf16>, vector<16x256xf32> -> vector<16x256xf32>
    %c6_40 = arith.constant 6 : index
    %c0_41 = arith.constant 0 : index
    %c0_42 = arith.constant 0 : index
    %53 = vector.load %arg3[%c6_40, %c0_41, %c0_42] : memref<8x1x256xf32, #tpu.memory_space<vmem>>, vector<1x1x256xf32>
    %54 = vector.shape_cast %53 : vector<1x1x256xf32> to vector<1x256xf32>
    %55 = vector.broadcast %54 : vector<1x256xf32> to vector<16x256xf32>
    %56 = arith.addf %52, %55 : vector<16x256xf32>
    %57 = arith.truncf %56 : vector<16x256xf32> to vector<16x256xbf16>
    %c7 = arith.constant 7 : index
    %c0_43 = arith.constant 0 : index
    %c0_44 = arith.constant 0 : index
    %58 = vector.load %arg2[%c7, %c0_43, %c0_44] : memref<8x256x256xbf16, #tpu.memory_space<vmem>>, vector<1x256x256xbf16>
    %59 = vector.shape_cast %58 : vector<1x256x256xbf16> to vector<256x256xbf16>
    %cst_45 = arith.constant dense<0.000000e+00> : vector<16x256xf32>
    %60 = tpu.matmul %57, %59, %cst_45 {dimension_numbers = #tpu.dot_dimension_numbers<[1], [0], [0], [1], [0, 0, 1, 1], [], []>} : vector<16x256xbf16>, vector<256x256xbf16>, vector<16x256xf32> -> vector<16x256xf32>
    %c7_46 = arith.constant 7 : index
    %c0_47 = arith.constant 0 : index
    %c0_48 = arith.constant 0 : index
    %61 = vector.load %arg3[%c7_46, %c0_47, %c0_48] : memref<8x1x256xf32, #tpu.memory_space<vmem>>, vector<1x1x256xf32>
    %62 = vector.shape_cast %61 : vector<1x1x256xf32> to vector<1x256xf32>
    %63 = vector.broadcast %62 : vector<1x256xf32> to vector<16x256xf32>
    %64 = arith.addf %60, %63 : vector<16x256xf32>
    %c0_49 = arith.constant 0 : index
    %c0_50 = arith.constant 0 : index
    %65 = vector.load %arg4[%c0_49, %c0_50] : memref<16x256xf32, #tpu.memory_space<vmem>>, vector<16x256xf32>
    tpu.vector_store %arg4[%c0_49, %c0_50], %64 {strides = array<i32>} : memref<16x256xf32, #tpu.memory_space<vmem>>, vector<16x256xf32>,
    return
  }
  func.func @transform_0(%arg0: i32) -> (i32, i32) {
    %c0_i32 = arith.constant 0 : i32
    %c0_i32_0 = arith.constant 0 : i32
    return %arg0, %c0_i32 : i32, i32
  }
  func.func @transform_1(%arg0: i32) -> (i32, i32, i32) {
    %c0_i32 = arith.constant 0 : i32
    %c0_i32_0 = arith.constant 0 : i32
    %c0_i32_1 = arith.constant 0 : i32
    %c0_i32_2 = arith.constant 0 : i32
    return %c0_i32, %c0_i32_0, %c0_i32_1 : i32, i32, i32
  }
  func.func @transform_2(%arg0: i32) -> (i32, i32, i32) {
    %c0_i32 = arith.constant 0 : i32
    %c0_i32_0 = arith.constant 0 : i32
    %c0_i32_1 = arith.constant 0 : i32
    %c0_i32_2 = arith.constant 0 : i32
    return %c0_i32, %c0_i32_0, %c0_i32_1 : i32, i32, i32
  }
  func.func @transform_3(%arg0: i32) -> (i32, i32) {
    %c0_i32 = arith.constant 0 : i32
    %c0_i32_0 = arith.constant 0 : i32
    return %arg0, %c0_i32 : i32, i32
  }
}

</mosaic_0001>

<llo_original>
// kernel: mapping_forward_prepared.1
$region0: #{mapping_forward_prepared.1}
  #allocation0 [shape = 'u32[]', space=smem, size = 0x4, offset = 0x4, fixed_abs, tag = 'smem constant byte address 0x4 - core index']
  #allocation1 [shape = 'u32[144,128]{1,0:T(1,128)}', space=vmem, size = 0x12000, scoped, tag = 'internal scratch']
  %s0 = inlined_call_operand.vmem [shape: f32[16,256], index: 0, kind: input, shape index: {}]
  %s1 = inlined_call_operand.hbm [shape: bf16[8,256,256], index: 1, kind: input, shape index: {}]
  %s2 = inlined_call_operand.vmem [shape: f32[8,1,256], index: 2, kind: input, shape index: {}]
  %s3 = inlined_call_operand.vmem [shape: f32[16,256], index: 3, kind: output, shape index: {}]
  %s4 = sld [smem:[#allocation0]]
  $region26: #{mapping_forward_prepared.1} parent=0
    _
  %s6 = ssub.s32 1, %s4
  %s7 = scalar_select 0, %s6, %s4
  $region1: #{mapping_forward_prepared.1} parent=0
    #allocation2 [shape = 'u8[1048576]{0}', space=vmem, size = 0x100000, scoped, tag = 'input window, operand 1, single buffered']
    #allocation3 [shape = 's32[1]{0}', space=sflag, size = 0x4, scoped, tag = 'scoped memory for mapping_forward_prepared.1']
    %8 = vsyncpa [#allocation3], 0
    // Predicated region
    $region2: #{mapping_forward_prepared.1} parent=1 // pred_check
      _
    $region3: #{mapping_forward_prepared.1} parent=1 // pred_check_branch
      %10 = sbr.rel (0) target = $region5
    $region4: #{mapping_forward_prepared.1} parent=1 // pred_region
      _
    $region5: #{mapping_forward_prepared.1} parent=1 // pred_fallthru
      _
    // Predicated region
    $region6: #{mapping_forward_prepared.1} parent=1 // pred_check
      _
    $region7: #{mapping_forward_prepared.1} parent=1 // pred_check_branch
      %12 = sbr.rel (0) target = $region9
    $region8: #{mapping_forward_prepared.1} parent=1 // pred_region
      %s14 = ssub.s32 32768, 32768
      %15 = vsyncadd [#allocation3], %s14
      %s16 = sshll.u32 [#allocation2], 4
      %s17 = int_to_ptr.vmem [resolvable:$true] %s16
      %22 = dma.hbm_to_vmem [thread:$0]  %s1, 32768, %s17, [#allocation3], 128, 128, 8
    $region9: #{mapping_forward_prepared.1} parent=1 // pred_fallthru
      _
    // Predicated region
    $region10: #{mapping_forward_prepared.1} parent=1 // pred_check
      _
    $region11: #{mapping_forward_prepared.1} parent=1 // pred_check_branch
      %24 = sbr.rel (0) target = $region13
    $region12: #{mapping_forward_prepared.1} parent=1 // pred_region
      _
    $region13: #{mapping_forward_prepared.1} parent=1 // pred_fallthru
      _
    // Predicated region
    $region14: #{mapping_forward_prepared.1} parent=1 // pred_check
      _
    $region15: #{mapping_forward_prepared.1} parent=1 // pred_check_branch
      %26 = sbr.rel (0) target = $region17
    $region16: #{mapping_forward_prepared.1} parent=1 // pred_region
      %27 = dma.done [#allocation3], 32768
    $region17: #{mapping_forward_prepared.1} parent=1 // pred_fallthru
      _
    %v28 = vld [vmem:[%s0] sm:$0xff]
    %v29 = vld [vmem:[%s0 + $0x8] sm:$0xff]
    %v30 = vld [vmem:[%s0 + $0x10] sm:$0xff]
    %v31 = vld [vmem:[%s0 + $0x18] sm:$0xff]
    %v32 = vpack.c.bf16 %v30, %v28
    %v33 = vpack.c.bf16 %v31, %v29
    %v34 = vld [vmem:[#allocation2] sm:$0xff]
    %v35 = vld [vmem:[#allocation2 + $0x8] sm:$0xff]
    %v36 = vld [vmem:[#allocation2 + $0x10] sm:$0xff]
    %v37 = vld [vmem:[#allocation2 + $0x18] sm:$0xff]
    %v38 = vld [vmem:[#allocation2 + $0x20] sm:$0xff]
    %v39 = vld [vmem:[#allocation2 + $0x28] sm:$0xff]
    %v40 = vld [vmem:[#allocation2 + $0x30] sm:$0xff]
    %v41 = vld [vmem:[#allocation2 + $0x38] sm:$0xff]
    %v42 = vld [vmem:[#allocation2 + $0x40] sm:$0xff]
    %v43 = vld [vmem:[#allocation2 + $0x48] sm:$0xff]
    %v44 = vld [vmem:[#allocation2 + $0x50] sm:$0xff]
    %v45 = vld [vmem:[#allocation2 + $0x58] sm:$0xff]
    %v46 = vld [vmem:[#allocation2 + $0x60] sm:$0xff]
    %v47 = vld [vmem:[#allocation2 + $0x68] sm:$0xff]
    %v48 = vld [vmem:[#allocation2 + $0x70] sm:$0xff]
    %v49 = vld [vmem:[#allocation2 + $0x78] sm:$0xff]
    %v50 = vld [vmem:[#allocation2 + $0x80] sm:$0xff]
    %v51 = vld [vmem:[#allocation2 + $0x88] sm:$0xff]
    %v52 = vld [vmem:[#allocation2 + $0x90] sm:$0xff]
    %v53 = vld [vmem:[#allocation2 + $0x98] sm:$0xff]
    %v54 = vld [vmem:[#allocation2 + $0xa0] sm:$0xff]
    %v55 = vld [vmem:[#allocation2 + $0xa8] sm:$0xff]
    %v56 = vld [vmem:[#allocation2 + $0xb0] sm:$0xff]
    %v57 = vld [vmem:[#allocation2 + $0xb8] sm:$0xff]
    %v58 = vld [vmem:[#allocation2 + $0xc0] sm:$0xff]
    %v59 = vld [vmem:[#allocation2 + $0xc8] sm:$0xff]
    %v60 = vld [vmem:[#allocation2 + $0xd0] sm:$0xff]
    %v61 = vld [vmem:[#allocation2 + $0xd8] sm:$0xff]
    %v62 = vld [vmem:[#allocation2 + $0xe0] sm:$0xff]
    %v63 = vld [vmem:[#allocation2 + $0xe8] sm:$0xff]
    %v64 = vld [vmem:[#allocation2 + $0xf0] sm:$0xff]
    %v65 = vld [vmem:[#allocation2 + $0xf8] sm:$0xff]
    %v66 = vld [vmem:[%s2] sm:$0x3]
    %v68 = vlaneseq
    %v69 = vshrl.u32 %v68, 7
    %v70 = vsub.s32 0, %v69
    %v71 = vrot.slane %v66, %v70
    %v72 = vlaneseq
    %v73 = vshrl.u32 %v72, 7
    %v74 = vsub.s32 1, %v73
    %v75 = vrot.slane %v66, %v74
    %v110 = vunpack.c.l.b16 %v34
    %v111 = vunpack.c.h.b16 %v34
    %v112 = vunpack.c.l.b16 %v35
    %v113 = vunpack.c.h.b16 %v35
    %v114 = vunpack.c.l.b16 %v36
    %v115 = vunpack.c.h.b16 %v36
    %v116 = vunpack.c.l.b16 %v37
    %v117 = vunpack.c.h.b16 %v37
    %v118 = vunpack.c.l.b16 %v38
    %v119 = vunpack.c.h.b16 %v38
    %v120 = vunpack.c.l.b16 %v39
    %v121 = vunpack.c.h.b16 %v39
    %v122 = vunpack.c.l.b16 %v40
    %v123 = vunpack.c.h.b16 %v40
    %v124 = vunpack.c.l.b16 %v41
    %v125 = vunpack.c.h.b16 %v41
    %v126 = vunpack.c.l.b16 %v42
    %v127 = vunpack.c.h.b16 %v42
    %v128 = vunpack.c.l.b16 %v43
    %v129 = vunpack.c.h.b16 %v43
    %v130 = vunpack.c.l.b16 %v44
    %v131 = vunpack.c.h.b16 %v44
    %v132 = vunpack.c.l.b16 %v45
    %v133 = vunpack.c.h.b16 %v45
    %v134 = vunpack.c.l.b16 %v46
    %v135 = vunpack.c.h.b16 %v46
    %v136 = vunpack.c.l.b16 %v47
    %v137 = vunpack.c.h.b16 %v47
    %v138 = vunpack.c.l.b16 %v48
    %v139 = vunpack.c.h.b16 %v48
    %v140 = vunpack.c.l.b16 %v49
    %v141 = vunpack.c.h.b16 %v49
    %v142 = vunpack.c.l.b16 %v50
    %v143 = vunpack.c.h.b16 %v50
    %v144 = vunpack.c.l.b16 %v51
    %v145 = vunpack.c.h.b16 %v51
    %v146 = vunpack.c.l.b16 %v52
    %v147 = vunpack.c.h.b16 %v52
    %v148 = vunpack.c.l.b16 %v53
    %v149 = vunpack.c.h.b16 %v53
    %v150 = vunpack.c.l.b16 %v54
    %v151 = vunpack.c.h.b16 %v54
    %v152 = vunpack.c.l.b16 %v55
    %v153 = vunpack.c.h.b16 %v55
    %v154 = vunpack.c.l.b16 %v56
    %v155 = vunpack.c.h.b16 %v56
    %v156 = vunpack.c.l.b16 %v57
    %v157 = vunpack.c.h.b16 %v57
    %v158 = vunpack.c.l.b16 %v58
    %v159 = vunpack.c.h.b16 %v58
    %v160 = vunpack.c.l.b16 %v59
    %v161 = vunpack.c.h.b16 %v59
    %v162 = vunpack.c.l.b16 %v60
    %v163 = vunpack.c.h.b16 %v60
    %v164 = vunpack.c.l.b16 %v61
    %v165 = vunpack.c.h.b16 %v61
    %v166 = vunpack.c.l.b16 %v62
    %v167 = vunpack.c.h.b16 %v62
    %v168 = vunpack.c.l.b16 %v63
    %v169 = vunpack.c.h.b16 %v63
    %v170 = vunpack.c.l.b16 %v64
    %v171 = vunpack.c.h.b16 %v64
    %v172 = vunpack.c.l.b16 %v65
    %v173 = vunpack.c.h.b16 %v65
    %v174 = vpack.c.b16 %v112, %v110
    %v175 = vpack.c.b16 %v113, %v111
    %v176 = vpack.c.b16 %v116, %v114
    %v177 = vpack.c.b16 %v117, %v115
    %v178 = vpack.c.b16 %v120, %v118
    %v179 = vpack.c.b16 %v121, %v119
    %v180 = vpack.c.b16 %v124, %v122
    %v181 = vpack.c.b16 %v125, %v123
    %v182 = vpack.c.b16 %v128, %v126
    %v183 = vpack.c.b16 %v129, %v127
    %v184 = vpack.c.b16 %v132, %v130
    %v185 = vpack.c.b16 %v133, %v131
    %v186 = vpack.c.b16 %v136, %v134
    %v187 = vpack.c.b16 %v137, %v135
    %v188 = vpack.c.b16 %v140, %v138
    %v189 = vpack.c.b16 %v141, %v139
    %v190 = vpack.c.b16 %v144, %v142
    %v191 = vpack.c.b16 %v145, %v143
    %v192 = vpack.c.b16 %v148, %v146
    %v193 = vpack.c.b16 %v149, %v147
    %v194 = vpack.c.b16 %v152, %v150
    %v195 = vpack.c.b16 %v153, %v151
    %v196 = vpack.c.b16 %v156, %v154
    %v197 = vpack.c.b16 %v157, %v155
    %v198 = vpack.c.b16 %v160, %v158
    %v199 = vpack.c.b16 %v161, %v159
    %v200 = vpack.c.b16 %v164, %v162
    %v201 = vpack.c.b16 %v165, %v163
    %v202 = vpack.c.b16 %v168, %v166
    %v203 = vpack.c.b16 %v169, %v167
    %v204 = vpack.c.b16 %v172, %v170
    %v205 = vpack.c.b16 %v173, %v171
    %238 = vmatprep.subr.bf16.mxu0 %v189
    %239 = vmatpush1.bf16.msra.mxu0 %v188
    %240 = vmatprep.subr.bf16.mxu0 %v187
    %241 = vmatpush1.bf16.msra.mxu0 %v186
    %242 = vmatprep.subr.bf16.mxu0 %v185
    %243 = vmatpush1.bf16.msra.mxu0 %v184
    %244 = vmatprep.subr.bf16.mxu0 %v183
    %245 = vmatpush1.bf16.msra.mxu0 %v182
    %246 = vmatprep.subr.bf16.mxu0 %v181
    %247 = vmatpush1.bf16.msra.mxu0 %v180
    %248 = vmatprep.subr.bf16.mxu0 %v179
    %249 = vmatpush1.bf16.msra.mxu0 %v178
    %250 = vmatprep.subr.bf16.mxu0 %v177
    %251 = vmatpush1.bf16.msra.mxu0 %v176
    %252 = vmatprep.subr.bf16.mxu0 %v175
    %253 = vmatpush1.bf16.msra.mxu0 %v174
    %254 = vmatprep.subr.bf16.mxu0 %v205
    %255 = vmatpush2.bf16.msra.mxu0 %v204
    %256 = vmatprep.subr.bf16.mxu0 %v203
    %257 = vmatpush2.bf16.msra.mxu0 %v202
    %258 = vmatprep.subr.bf16.mxu0 %v201
    %259 = vmatpush2.bf16.msra.mxu0 %v200
    %260 = vmatprep.subr.bf16.mxu0 %v199
    %261 = vmatpush2.bf16.msra.mxu0 %v198
    %262 = vmatprep.subr.bf16.mxu0 %v197
    %263 = vmatpush2.bf16.msra.mxu0 %v196
    %264 = vmatprep.subr.bf16.mxu0 %v195
    %265 = vmatpush2.bf16.msra.mxu0 %v194
    %266 = vmatprep.subr.bf16.mxu0 %v193
    %267 = vmatpush2.bf16.msra.mxu0 %v192
    %268 = vmatprep.subr.bf16.mxu0 %v191
    %269 = vmatpush2.bf16.msra.mxu0 %v190
    %270 = vmatprep.mubr.bf16.mxu0 %v33
    %271 = vmatmul.mubr.bf16.gmra.mxu0 %v32
    %v272 = vpop.f32.mrf.mxu0
    %v273 = vadd.f32 %v71, %v272
    %v274 = vpop.f32.mrf.mxu0
    %v275 = vadd.f32 %v75, %v274
    %v276 = vpop.f32.mrf.mxu0
    %v277 = vadd.f32 %v71, %v276
    %v278 = vpop.f32.mrf.mxu0
    %v279 = vadd.f32 %v75, %v278
    %280 = vdwg.mxu0
    %v281 = vpack.c.bf16 %v277, %v273
    %v282 = vpack.c.bf16 %v279, %v275
    %s283 = scalar_lea.vmem [#allocation2], 256
    %v284 = vld [vmem:[%s283] sm:$0xff]
    %v285 = vld [vmem:[%s283 + $0x8] sm:$0xff]
    %v286 = vld [vmem:[%s283 + $0x10] sm:$0xff]
    %v287 = vld [vmem:[%s283 + $0x18] sm:$0xff]
    %v288 = vld [vmem:[%s283 + $0x20] sm:$0xff]
    %v289 = vld [vmem:[%s283 + $0x28] sm:$0xff]
    %v290 = vld [vmem:[%s283 + $0x30] sm:$0xff]
    %v291 = vld [vmem:[%s283 + $0x38] sm:$0xff]
    %v292 = vld [vmem:[%s283 + $0x40] sm:$0xff]
    %v293 = vld [vmem:[%s283 + $0x48] sm:$0xff]
    %v294 = vld [vmem:[%s283 + $0x50] sm:$0xff]
    %v295 = vld [vmem:[%s283 + $0x58] sm:$0xff]
    %v296 = vld [vmem:[%s283 + $0x60] sm:$0xff]
    %v297 = vld [vmem:[%s283 + $0x68] sm:$0xff]
    %v298 = vld [vmem:[%s283 + $0x70] sm:$0xff]
    %v299 = vld [vmem:[%s283 + $0x78] sm:$0xff]
    %v300 = vld [vmem:[%s283 + $0x80] sm:$0xff]
    %v301 = vld [vmem:[%s283 + $0x88] sm:$0xff]
    %v302 = vld [vmem:[%s283 + $0x90] sm:$0xff]
    %v303 = vld [vmem:[%s283 + $0x98] sm:$0xff]
    %v304 = vld [vmem:[%s283 + $0xa0] sm:$0xff]
    %v305 = vld [vmem:[%s283 + $0xa8] sm:$0xff]
    %v306 = vld [vmem:[%s283 + $0xb0] sm:$0xff]
    %v307 = vld [vmem:[%s283 + $0xb8] sm:$0xff]
    %v308 = vld [vmem:[%s283 + $0xc0] sm:$0xff]
    %v309 = vld [vmem:[%s283 + $0xc8] sm:$0xff]
    %v310 = vld [vmem:[%s283 + $0xd0] sm:$0xff]
    %v311 = vld [vmem:[%s283 + $0xd8] sm:$0xff]
    %v312 = vld [vmem:[%s283 + $0xe0] sm:$0xff]
    %v313 = vld [vmem:[%s283 + $0xe8] sm:$0xff]
    %v314 = vld [vmem:[%s283 + $0xf0] sm:$0xff]
    %v315 = vld [vmem:[%s283 + $0xf8] sm:$0xff]
    %s316 = scalar_lea.vmem %s2, 2
    %v317 = vld [vmem:[%s316] sm:$0x3]
    %v319 = vlaneseq
    %v320 = vshrl.u32 %v319, 7
    %v321 = vsub.s32 0, %v320
    %v322 = vrot.slane %v317, %v321
    %v323 = vlaneseq
    %v324 = vshrl.u32 %v323, 7
    %v325 = vsub.s32 1, %v324
    %v326 = vrot.slane %v317, %v325
    %v361 = vunpack.c.l.b16 %v284
    %v362 = vunpack.c.h.b16 %v284
    %v363 = vunpack.c.l.b16 %v285
    %v364 = vunpack.c.h.b16 %v285
    %v365 = vunpack.c.l.b16 %v286
    %v366 = vunpack.c.h.b16 %v286
    %v367 = vunpack.c.l.b16 %v287
    %v368 = vunpack.c.h.b16 %v287
    %v369 = vunpack.c.l.b16 %v288
    %v370 = vunpack.c.h.b16 %v288
    %v371 = vunpack.c.l.b16 %v289
    %v372 = vunpack.c.h.b16 %v289
    %v373 = vunpack.c.l.b16 %v290
    %v374 = vunpack.c.h.b16 %v290
    %v375 = vunpack.c.l.b16 %v291
    %v376 = vunpack.c.h.b16 %v291
    %v377 = vunpack.c.l.b16 %v292
    %v378 = vunpack.c.h.b16 %v292
    %v379 = vunpack.c.l.b16 %v293
    %v380 = vunpack.c.h.b16 %v293
    %v381 = vunpack.c.l.b16 %v294
    %v382 = vunpack.c.h.b16 %v294
    %v383 = vunpack.c.l.b16 %v295
    %v384 = vunpack.c.h.b16 %v295
    %v385 = vunpack.c.l.b16 %v296
    %v386 = vunpack.c.h.b16 %v296
    %v387 = vunpack.c.l.b16 %v297
    %v388 = vunpack.c.h.b16 %v297
    %v389 = vunpack.c.l.b16 %v298
    %v390 = vunpack.c.h.b16 %v298
    %v391 = vunpack.c.l.b16 %v299
    %v392 = vunpack.c.h.b16 %v299
    %v393 = vunpack.c.l.b16 %v300
    %v394 = vunpack.c.h.b16 %v300
    %v395 = vunpack.c.l.b16 %v301
    %v396 = vunpack.c.h.b16 %v301
    %v397 = vunpack.c.l.b16 %v302
    %v398 = vunpack.c.h.b16 %v302
    %v399 = vunpack.c.l.b16 %v303
    %v400 = vunpack.c.h.b16 %v303
    %v401 = vunpack.c.l.b16 %v304
    %v402 = vunpack.c.h.b16 %v304
    %v403 = vunpack.c.l.b16 %v305
    %v404 = vunpack.c.h.b16 %v305
    %v405 = vunpack.c.l.b16 %v306
    %v406 = vunpack.c.h.b16 %v306
    %v407 = vunpack.c.l.b16 %v307
    %v408 = vunpack.c.h.b16 %v307
    %v409 = vunpack.c.l.b16 %v308
    %v410 = vunpack.c.h.b16 %v308
    %v411 = vunpack.c.l.b16 %v309
    %v412 = vunpack.c.h.b16 %v309
    %v413 = vunpack.c.l.b16 %v310
    %v414 = vunpack.c.h.b16 %v310
    %v415 = vunpack.c.l.b16 %v311
    %v416 = vunpack.c.h.b16 %v311
    %v417 = vunpack.c.l.b16 %v312
    %v418 = vunpack.c.h.b16 %v312
    %v419 = vunpack.c.l.b16 %v313
    %v420 = vunpack.c.h.b16 %v313
    %v421 = vunpack.c.l.b16 %v314
    %v422 = vunpack.c.h.b16 %v314
    %v423 = vunpack.c.l.b16 %v315
    %v424 = vunpack.c.h.b16 %v315
    %v425 = vpack.c.b16 %v363, %v361
    %v426 = vpack.c.b16 %v364, %v362
    %v427 = vpack.c.b16 %v367, %v365
    %v428 = vpack.c.b16 %v368, %v366
    %v429 = vpack.c.b16 %v371, %v369
    %v430 = vpack.c.b16 %v372, %v370
    %v431 = vpack.c.b16 %v375, %v373
    %v432 = vpack.c.b16 %v376, %v374
    %v433 = vpack.c.b16 %v379, %v377
    %v434 = vpack.c.b16 %v380, %v378
    %v435 = vpack.c.b16 %v383, %v381
    %v436 = vpack.c.b16 %v384, %v382
    %v437 = vpack.c.b16 %v387, %v385
    %v438 = vpack.c.b16 %v388, %v386
    %v439 = vpack.c.b16 %v391, %v389
    %v440 = vpack.c.b16 %v392, %v390
    %v441 = vpack.c.b16 %v395, %v393
    %v442 = vpack.c.b16 %v396, %v394
    %v443 = vpack.c.b16 %v399, %v397
    %v444 = vpack.c.b16 %v400, %v398
    %v445 = vpack.c.b16 %v403, %v401
    %v446 = vpack.c.b16 %v404, %v402
    %v447 = vpack.c.b16 %v407, %v405
    %v448 = vpack.c.b16 %v408, %v406
    %v449 = vpack.c.b16 %v411, %v409
    %v450 = vpack.c.b16 %v412, %v410
    %v451 = vpack.c.b16 %v415, %v413
    %v452 = vpack.c.b16 %v416, %v414
    %v453 = vpack.c.b16 %v419, %v417
    %v454 = vpack.c.b16 %v420, %v418
    %v455 = vpack.c.b16 %v423, %v421
    %v456 = vpack.c.b16 %v424, %v422
    %489 = vmatprep.subr.bf16.mxu0 %v440
    %490 = vmatpush1.bf16.msra.mxu0 %v439
    %491 = vmatprep.subr.bf16.mxu0 %v438
    %492 = vmatpush1.bf16.msra.mxu0 %v437
    %493 = vmatprep.subr.bf16.mxu0 %v436
    %494 = vmatpush1.bf16.msra.mxu0 %v435
    %495 = vmatprep.subr.bf16.mxu0 %v434
    %496 = vmatpush1.bf16.msra.mxu0 %v433
    %497 = vmatprep.subr.bf16.mxu0 %v432
    %498 = vmatpush1.bf16.msra.mxu0 %v431
    %499 = vmatprep.subr.bf16.mxu0 %v430
    %500 = vmatpush1.bf16.msra.mxu0 %v429
    %501 = vmatprep.subr.bf16.mxu0 %v428
    %502 = vmatpush1.bf16.msra.mxu0 %v427
    %503 = vmatprep.subr.bf16.mxu0 %v426
    %504 = vmatpush1.bf16.msra.mxu0 %v425
    %505 = vmatprep.subr.bf16.mxu0 %v456
    %506 = vmatpush2.bf16.msra.mxu0 %v455
    %507 = vmatprep.subr.bf16.mxu0 %v454
    %508 = vmatpush2.bf16.msra.mxu0 %v453
    %509 = vmatprep.subr.bf16.mxu0 %v452
    %510 = vmatpush2.bf16.msra.mxu0 %v451
    %511 = vmatprep.subr.bf16.mxu0 %v450
    %512 = vmatpush2.bf16.msra.mxu0 %v449
    %513 = vmatprep.subr.bf16.mxu0 %v448
    %514 = vmatpush2.bf16.msra.mxu0 %v447
    %515 = vmatprep.subr.bf16.mxu0 %v446
    %516 = vmatpush2.bf16.msra.mxu0 %v445
    %517 = vmatprep.subr.bf16.mxu0 %v444
    %518 = vmatpush2.bf16.msra.mxu0 %v443
    %519 = vmatprep.subr.bf16.mxu0 %v442
    %520 = vmatpush2.bf16.msra.mxu0 %v441
    %521 = vmatprep.mubr.bf16.mxu0 %v282
    %522 = vmatmul.mubr.bf16.gmra.mxu0 %v281
    %v523 = vpop.f32.mrf.mxu0
    %v524 = vadd.f32 %v322, %v523
    %v525 = vpop.f32.mrf.mxu0
    %v526 = vadd.f32 %v326, %v525
    %v527 = vpop.f32.mrf.mxu0
    %v528 = vadd.f32 %v322, %v527
    %v529 = vpop.f32.mrf.mxu0
    %v530 = vadd.f32 %v326, %v529
    %531 = vdwg.mxu0
    %v532 = vpack.c.bf16 %v528, %v524
    %v533 = vpack.c.bf16 %v530, %v526
    %s534 = scalar_lea.vmem [#allocation2], 512
    %v535 = vld [vmem:[%s534] sm:$0xff]
    %v536 = vld [vmem:[%s534 + $0x8] sm:$0xff]
    %v537 = vld [vmem:[%s534 + $0x10] sm:$0xff]
    %v538 = vld [vmem:[%s534 + $0x18] sm:$0xff]
    %v539 = vld [vmem:[%s534 + $0x20] sm:$0xff]
    %v540 = vld [vmem:[%s534 + $0x28] sm:$0xff]
    %v541 = vld [vmem:[%s534 + $0x30] sm:$0xff]
    %v542 = vld [vmem:[%s534 + $0x38] sm:$0xff]
    %v543 = vld [vmem:[%s534 + $0x40] sm:$0xff]
    %v544 = vld [vmem:[%s534 + $0x48] sm:$0xff]
    %v545 = vld [vmem:[%s534 + $0x50] sm:$0xff]
    %v546 = vld [vmem:[%s534 + $0x58] sm:$0xff]
    %v547 = vld [vmem:[%s534 + $0x60] sm:$0xff]
    %v548 = vld [vmem:[%s534 + $0x68] sm:$0xff]
    %v549 = vld [vmem:[%s534 + $0x70] sm:$0xff]
    %v550 = vld [vmem:[%s534 + $0x78] sm:$0xff]
    %v551 = vld [vmem:[%s534 + $0x80] sm:$0xff]
    %v552 = vld [vmem:[%s534 + $0x88] sm:$0xff]
    %v553 = vld [vmem:[%s534 + $0x90] sm:$0xff]
    %v554 = vld [vmem:[%s534 + $0x98] sm:$0xff]
    %v555 = vld [vmem:[%s534 + $0xa0] sm:$0xff]
    %v556 = vld [vmem:[%s534 + $0xa8] sm:$0xff]
    %v557 = vld [vmem:[%s534 + $0xb0] sm:$0xff]
    %v558 = vld [vmem:[%s534 + $0xb8] sm:$0xff]
    %v559 = vld [vmem:[%s534 + $0xc0] sm:$0xff]
    %v560 = vld [vmem:[%s534 + $0xc8] sm:$0xff]
    %v561 = vld [vmem:[%s534 + $0xd0] sm:$0xff]
    %v562 = vld [vmem:[%s534 + $0xd8] sm:$0xff]
    %v563 = vld [vmem:[%s534 + $0xe0] sm:$0xff]
    %v564 = vld [vmem:[%s534 + $0xe8] sm:$0xff]
    %v565 = vld [vmem:[%s534 + $0xf0] sm:$0xff]
    %v566 = vld [vmem:[%s534 + $0xf8] sm:$0xff]
    %s567 = scalar_lea.vmem %s2, 4
    %v568 = vld [vmem:[%s567] sm:$0x3]
    %v570 = vlaneseq
    %v571 = vshrl.u32 %v570, 7
    %v572 = vsub.s32 0, %v571
    %v573 = vrot.slane %v568, %v572
    %v574 = vlaneseq
    %v575 = vshrl.u32 %v574, 7
    %v576 = vsub.s32 1, %v575
    %v577 = vrot.slane %v568, %v576
    %v612 = vunpack.c.l.b16 %v535
    %v613 = vunpack.c.h.b16 %v535
    %v614 = vunpack.c.l.b16 %v536
    %v615 = vunpack.c.h.b16 %v536
    %v616 = vunpack.c.l.b16 %v537
    %v617 = vunpack.c.h.b16 %v537
    %v618 = vunpack.c.l.b16 %v538
    %v619 = vunpack.c.h.b16 %v538
    %v620 = vunpack.c.l.b16 %v539
    %v621 = vunpack.c.h.b16 %v539
    %v622 = vunpack.c.l.b16 %v540
    %v623 = vunpack.c.h.b16 %v540
    %v624 = vunpack.c.l.b16 %v541
    %v625 = vunpack.c.h.b16 %v541
    %v626 = vunpack.c.l.b16 %v542
    %v627 = vunpack.c.h.b16 %v542
    %v628 = vunpack.c.l.b16 %v543
    %v629 = vunpack.c.h.b16 %v543
    %v630 = vunpack.c.l.b16 %v544
    %v631 = vunpack.c.h.b16 %v544
    %v632 = vunpack.c.l.b16 %v545
    %v633 = vunpack.c.h.b16 %v545
    %v634 = vunpack.c.l.b16 %v546
    %v635 = vunpack.c.h.b16 %v546
    %v636 = vunpack.c.l.b16 %v547
    %v637 = vunpack.c.h.b16 %v547
    %v638 = vunpack.c.l.b16 %v548
    %v639 = vunpack.c.h.b16 %v548
    %v640 = vunpack.c.l.b16 %v549
    %v641 = vunpack.c.h.b16 %v549
    %v642 = vunpack.c.l.b16 %v550
    %v643 = vunpack.c.h.b16 %v550
    %v644 = vunpack.c.l.b16 %v551
    %v645 = vunpack.c.h.b16 %v551
    %v646 = vunpack.c.l.b16 %v552
    %v647 = vunpack.c.h.b16 %v552
    %v648 = vunpack.c.l.b16 %v553
    %v649 = vunpack.c.h.b16 %v553
    %v650 = vunpack.c.l.b16 %v554
    %v651 = vunpack.c.h.b16 %v554
    %v652 = vunpack.c.l.b16 %v555
    %v653 = vunpack.c.h.b16 %v555
    %v654 = vunpack.c.l.b16 %v556
    %v655 = vunpack.c.h.b16 %v556
    %v656 = vunpack.c.l.b16 %v557
    %v657 = vunpack.c.h.b16 %v557
    %v658 = vunpack.c.l.b16 %v558
    %v659 = vunpack.c.h.b16 %v558
    %v660 = vunpack.c.l.b16 %v559
    %v661 = vunpack.c.h.b16 %v559
    %v662 = vunpack.c.l.b16 %v560
    %v663 = vunpack.c.h.b16 %v560
    %v664 = vunpack.c.l.b16 %v561
    %v665 = vunpack.c.h.b16 %v561
    %v666 = vunpack.c.l.b16 %v562
    %v667 = vunpack.c.h.b16 %v562
    %v668 = vunpack.c.l.b16 %v563
    %v669 = vunpack.c.h.b16 %v563
    %v670 = vunpack.c.l.b16 %v564
    %v671 = vunpack.c.h.b16 %v564
    %v672 = vunpack.c.l.b16 %v565
    %v673 = vunpack.c.h.b16 %v565
    %v674 = vunpack.c.l.b16 %v566
    %v675 = vunpack.c.h.b16 %v566
    %v676 = vpack.c.b16 %v614, %v612
    %v677 = vpack.c.b16 %v615, %v613
    %v678 = vpack.c.b16 %v618, %v616
    %v679 = vpack.c.b16 %v619, %v617
    %v680 = vpack.c.b16 %v622, %v620
    %v681 = vpack.c.b16 %v623, %v621
    %v682 = vpack.c.b16 %v626, %v624
    %v683 = vpack.c.b16 %v627, %v625
    %v684 = vpack.c.b16 %v630, %v628
    %v685 = vpack.c.b16 %v631, %v629
    %v686 = vpack.c.b16 %v634, %v632
    %v687 = vpack.c.b16 %v635, %v633
    %v688 = vpack.c.b16 %v638, %v636
    %v689 = vpack.c.b16 %v639, %v637
    %v690 = vpack.c.b16 %v642, %v640
    %v691 = vpack.c.b16 %v643, %v641
    %v692 = vpack.c.b16 %v646, %v644
    %v693 = vpack.c.b16 %v647, %v645
    %v694 = vpack.c.b16 %v650, %v648
    %v695 = vpack.c.b16 %v651, %v649
    %v696 = vpack.c.b16 %v654, %v652
    %v697 = vpack.c.b16 %v655, %v653
    %v698 = vpack.c.b16 %v658, %v656
    %v699 = vpack.c.b16 %v659, %v657
    %v700 = vpack.c.b16 %v662, %v660
    %v701 = vpack.c.b16 %v663, %v661
    %v702 = vpack.c.b16 %v666, %v664
    %v703 = vpack.c.b16 %v667, %v665
    %v704 = vpack.c.b16 %v670, %v668
    %v705 = vpack.c.b16 %v671, %v669
    %v706 = vpack.c.b16 %v674, %v672
    %v707 = vpack.c.b16 %v675, %v673
    %740 = vmatprep.subr.bf16.mxu0 %v691
    %741 = vmatpush1.bf16.msra.mxu0 %v690
    %742 = vmatprep.subr.bf16.mxu0 %v689
    %743 = vmatpush1.bf16.msra.mxu0 %v688
    %744 = vmatprep.subr.bf16.mxu0 %v687
    %745 = vmatpush1.bf16.msra.mxu0 %v686
    %746 = vmatprep.subr.bf16.mxu0 %v685
    %747 = vmatpush1.bf16.msra.mxu0 %v684
    %748 = vmatprep.subr.bf16.mxu0 %v683
    %749 = vmatpush1.bf16.msra.mxu0 %v682
    %750 = vmatprep.subr.bf16.mxu0 %v681
    %751 = vmatpush1.bf16.msra.mxu0 %v680
    %752 = vmatprep.subr.bf16.mxu0 %v679
    %753 = vmatpush1.bf16.msra.mxu0 %v678
    %754 = vmatprep.subr.bf16.mxu0 %v677
    %755 = vmatpush1.bf16.msra.mxu0 %v676
    %756 = vmatprep.subr.bf16.mxu0 %v707
    %757 = vmatpush2.bf16.msra.mxu0 %v706
    %758 = vmatprep.subr.bf16.mxu0 %v705
    %759 = vmatpush2.bf16.msra.mxu0 %v704
    %760 = vmatprep.subr.bf16.mxu0 %v703
    %761 = vmatpush2.bf16.msra.mxu0 %v702
    %762 = vmatprep.subr.bf16.mxu0 %v701
    %763 = vmatpush2.bf16.msra.mxu0 %v700
    %764 = vmatprep.subr.bf16.mxu0 %v699
    %765 = vmatpush2.bf16.msra.mxu0 %v698
    %766 = vmatprep.subr.bf16.mxu0 %v697
    %767 = vmatpush2.bf16.msra.mxu0 %v696
    %768 = vmatprep.subr.bf16.mxu0 %v695
    %769 = vmatpush2.bf16.msra.mxu0 %v694
    %770 = vmatprep.subr.bf16.mxu0 %v693
    %771 = vmatpush2.bf16.msra.mxu0 %v692
    %772 = vmatprep.mubr.bf16.mxu0 %v533
    %773 = vmatmul.mubr.bf16.gmra.mxu0 %v532
    %v774 = vpop.f32.mrf.mxu0
    %v775 = vadd.f32 %v573, %v774
    %v776 = vpop.f32.mrf.mxu0
    %v777 = vadd.f32 %v577, %v776
    %v778 = vpop.f32.mrf.mxu0
    %v779 = vadd.f32 %v573, %v778
    %v780 = vpop.f32.mrf.mxu0
    %v781 = vadd.f32 %v577, %v780
    %782 = vdwg.mxu0
    %v783 = vpack.c.bf16 %v779, %v775
    %v784 = vpack.c.bf16 %v781, %v777
    %s785 = scalar_lea.vmem [#allocation2], 768
    %v786 = vld [vmem:[%s785] sm:$0xff]
    %v787 = vld [vmem:[%s785 + $0x8] sm:$0xff]
    %v788 = vld [vmem:[%s785 + $0x10] sm:$0xff]
    %v789 = vld [vmem:[%s785 + $0x18] sm:$0xff]
    %v790 = vld [vmem:[%s785 + $0x20] sm:$0xff]
    %v791 = vld [vmem:[%s785 + $0x28] sm:$0xff]
    %v792 = vld [vmem:[%s785 + $0x30] sm:$0xff]
    %v793 = vld [vmem:[%s785 + $0x38] sm:$0xff]
    %v794 = vld [vmem:[%s785 + $0x40] sm:$0xff]
    %v795 = vld [vmem:[%s785 + $0x48] sm:$0xff]
    %v796 = vld [vmem:[%s785 + $0x50] sm:$0xff]
    %v797 = vld [vmem:[%s785 + $0x58] sm:$0xff]
    %v798 = vld [vmem:[%s785 + $0x60] sm:$0xff]
    %v799 = vld [vmem:[%s785 + $0x68] sm:$0xff]
    %v800 = vld [vmem:[%s785 + $0x70] sm:$0xff]
    %v801 = vld [vmem:[%s785 + $0x78] sm:$0xff]
    %v802 = vld [vmem:[%s785 + $0x80] sm:$0xff]
    %v803 = vld [vmem:[%s785 + $0x88] sm:$0xff]
    %v804 = vld [vmem:[%s785 + $0x90] sm:$0xff]
    %v805 = vld [vmem:[%s785 + $0x98] sm:$0xff]
    %v806 = vld [vmem:[%s785 + $0xa0] sm:$0xff]
    %v807 = vld [vmem:[%s785 + $0xa8] sm:$0xff]
    %v808 = vld [vmem:[%s785 + $0xb0] sm:$0xff]
    %v809 = vld [vmem:[%s785 + $0xb8] sm:$0xff]
    %v810 = vld [vmem:[%s785 + $0xc0] sm:$0xff]
    %v811 = vld [vmem:[%s785 + $0xc8] sm:$0xff]
    %v812 = vld [vmem:[%s785 + $0xd0] sm:$0xff]
    %v813 = vld [vmem:[%s785 + $0xd8] sm:$0xff]
    %v814 = vld [vmem:[%s785 + $0xe0] sm:$0xff]
    %v815 = vld [vmem:[%s785 + $0xe8] sm:$0xff]
    %v816 = vld [vmem:[%s785 + $0xf0] sm:$0xff]
    %v817 = vld [vmem:[%s785 + $0xf8] sm:$0xff]
    %s818 = scalar_lea.vmem %s2, 6
    %v819 = vld [vmem:[%s818] sm:$0x3]
    %v821 = vlaneseq
    %v822 = vshrl.u32 %v821, 7
    %v823 = vsub.s32 0, %v822
    %v824 = vrot.slane %v819, %v823
    %v825 = vlaneseq
    %v826 = vshrl.u32 %v825, 7
    %v827 = vsub.s32 1, %v826
    %v828 = vrot.slane %v819, %v827
    %v863 = vunpack.c.l.b16 %v786
    %v864 = vunpack.c.h.b16 %v786
    %v865 = vunpack.c.l.b16 %v787
    %v866 = vunpack.c.h.b16 %v787
    %v867 = vunpack.c.l.b16 %v788
    %v868 = vunpack.c.h.b16 %v788
    %v869 = vunpack.c.l.b16 %v789
    %v870 = vunpack.c.h.b16 %v789
    %v871 = vunpack.c.l.b16 %v790
    %v872 = vunpack.c.h.b16 %v790
    %v873 = vunpack.c.l.b16 %v791
    %v874 = vunpack.c.h.b16 %v791
    %v875 = vunpack.c.l.b16 %v792
    %v876 = vunpack.c.h.b16 %v792
    %v877 = vunpack.c.l.b16 %v793
    %v878 = vunpack.c.h.b16 %v793
    %v879 = vunpack.c.l.b16 %v794
    %v880 = vunpack.c.h.b16 %v794
    %v881 = vunpack.c.l.b16 %v795
    %v882 = vunpack.c.h.b16 %v795
    %v883 = vunpack.c.l.b16 %v796
    %v884 = vunpack.c.h.b16 %v796
    %v885 = vunpack.c.l.b16 %v797
    %v886 = vunpack.c.h.b16 %v797
    %v887 = vunpack.c.l.b16 %v798
    %v888 = vunpack.c.h.b16 %v798
    %v889 = vunpack.c.l.b16 %v799
    %v890 = vunpack.c.h.b16 %v799
    %v891 = vunpack.c.l.b16 %v800
    %v892 = vunpack.c.h.b16 %v800
    %v893 = vunpack.c.l.b16 %v801
    %v894 = vunpack.c.h.b16 %v801
    %v895 = vunpack.c.l.b16 %v802
    %v896 = vunpack.c.h.b16 %v802
    %v897 = vunpack.c.l.b16 %v803
    %v898 = vunpack.c.h.b16 %v803
    %v899 = vunpack.c.l.b16 %v804
    %v900 = vunpack.c.h.b16 %v804
    %v901 = vunpack.c.l.b16 %v805
    %v902 = vunpack.c.h.b16 %v805
    %v903 = vunpack.c.l.b16 %v806
    %v904 = vunpack.c.h.b16 %v806
    %v905 = vunpack.c.l.b16 %v807
    %v906 = vunpack.c.h.b16 %v807
    %v907 = vunpack.c.l.b16 %v808
    %v908 = vunpack.c.h.b16 %v808
    %v909 = vunpack.c.l.b16 %v809
    %v910 = vunpack.c.h.b16 %v809
    %v911 = vunpack.c.l.b16 %v810
    %v912 = vunpack.c.h.b16 %v810
    %v913 = vunpack.c.l.b16 %v811
    %v914 = vunpack.c.h.b16 %v811
    %v915 = vunpack.c.l.b16 %v812
    %v916 = vunpack.c.h.b16 %v812
    %v917 = vunpack.c.l.b16 %v813
    %v918 = vunpack.c.h.b16 %v813
    %v919 = vunpack.c.l.b16 %v814
    %v920 = vunpack.c.h.b16 %v814
    %v921 = vunpack.c.l.b16 %v815
    %v922 = vunpack.c.h.b16 %v815
    %v923 = vunpack.c.l.b16 %v816
    %v924 = vunpack.c.h.b16 %v816
    %v925 = vunpack.c.l.b16 %v817
    %v926 = vunpack.c.h.b16 %v817
    %v927 = vpack.c.b16 %v865, %v863
    %v928 = vpack.c.b16 %v866, %v864
    %v929 = vpack.c.b16 %v869, %v867
    %v930 = vpack.c.b16 %v870, %v868
    %v931 = vpack.c.b16 %v873, %v871
    %v932 = vpack.c.b16 %v874, %v872
    %v933 = vpack.c.b16 %v877, %v875
    %v934 = vpack.c.b16 %v878, %v876
    %v935 = vpack.c.b16 %v881, %v879
    %v936 = vpack.c.b16 %v882, %v880
    %v937 = vpack.c.b16 %v885, %v883
    %v938 = vpack.c.b16 %v886, %v884
    %v939 = vpack.c.b16 %v889, %v887
    %v940 = vpack.c.b16 %v890, %v888
    %v941 = vpack.c.b16 %v893, %v891
    %v942 = vpack.c.b16 %v894, %v892
    %v943 = vpack.c.b16 %v897, %v895
    %v944 = vpack.c.b16 %v898, %v896
    %v945 = vpack.c.b16 %v901, %v899
    %v946 = vpack.c.b16 %v902, %v900
    %v947 = vpack.c.b16 %v905, %v903
    %v948 = vpack.c.b16 %v906, %v904
    %v949 = vpack.c.b16 %v909, %v907
    %v950 = vpack.c.b16 %v910, %v908
    %v951 = vpack.c.b16 %v913, %v911
    %v952 = vpack.c.b16 %v914, %v912
    %v953 = vpack.c.b16 %v917, %v915
    %v954 = vpack.c.b16 %v918, %v916
    %v955 = vpack.c.b16 %v921, %v919
    %v956 = vpack.c.b16 %v922, %v920
    %v957 = vpack.c.b16 %v925, %v923
    %v958 = vpack.c.b16 %v926, %v924
    %991 = vmatprep.subr.bf16.mxu0 %v942
    %992 = vmatpush1.bf16.msra.mxu0 %v941
    %993 = vmatprep.subr.bf16.mxu0 %v940
    %994 = vmatpush1.bf16.msra.mxu0 %v939
    %995 = vmatprep.subr.bf16.mxu0 %v938
    %996 = vmatpush1.bf16.msra.mxu0 %v937
    %997 = vmatprep.subr.bf16.mxu0 %v936
    %998 = vmatpush1.bf16.msra.mxu0 %v935
    %999 = vmatprep.subr.bf16.mxu0 %v934
    %1000 = vmatpush1.bf16.msra.mxu0 %v933
    %1001 = vmatprep.subr.bf16.mxu0 %v932
    %1002 = vmatpush1.bf16.msra.mxu0 %v931
    %1003 = vmatprep.subr.bf16.mxu0 %v930
    %1004 = vmatpush1.bf16.msra.mxu0 %v929
    %1005 = vmatprep.subr.bf16.mxu0 %v928
    %1006 = vmatpush1.bf16.msra.mxu0 %v927
    %1007 = vmatprep.subr.bf16.mxu0 %v958
    %1008 = vmatpush2.bf16.msra.mxu0 %v957
    %1009 = vmatprep.subr.bf16.mxu0 %v956
    %1010 = vmatpush2.bf16.msra.mxu0 %v955
    %1011 = vmatprep.subr.bf16.mxu0 %v954
    %1012 = vmatpush2.bf16.msra.mxu0 %v953
    %1013 = vmatprep.subr.bf16.mxu0 %v952
    %1014 = vmatpush2.bf16.msra.mxu0 %v951
    %1015 = vmatprep.subr.bf16.mxu0 %v950
    %1016 = vmatpush2.bf16.msra.mxu0 %v949
    %1017 = vmatprep.subr.bf16.mxu0 %v948
    %1018 = vmatpush2.bf16.msra.mxu0 %v947
    %1019 = vmatprep.subr.bf16.mxu0 %v946
    %1020 = vmatpush2.bf16.msra.mxu0 %v945
    %1021 = vmatprep.subr.bf16.mxu0 %v944
    %1022 = vmatpush2.bf16.msra.mxu0 %v943
    %1023 = vmatprep.mubr.bf16.mxu0 %v784
    %1024 = vmatmul.mubr.bf16.gmra.mxu0 %v783
    %v1025 = vpop.f32.mrf.mxu0
    %v1026 = vadd.f32 %v824, %v1025
    %v1027 = vpop.f32.mrf.mxu0
    %v1028 = vadd.f32 %v828, %v1027
    %v1029 = vpop.f32.mrf.mxu0
    %v1030 = vadd.f32 %v824, %v1029
    %v1031 = vpop.f32.mrf.mxu0
    %v1032 = vadd.f32 %v828, %v1031
    %1033 = vdwg.mxu0
    %v1034 = vpack.c.bf16 %v1030, %v1026
    %v1035 = vpack.c.bf16 %v1032, %v1028
    %s1036 = scalar_lea.vmem [#allocation2], 1024
    %v1037 = vld [vmem:[%s1036] sm:$0xff]
    %v1038 = vld [vmem:[%s1036 + $0x8] sm:$0xff]
    %v1039 = vld [vmem:[%s1036 + $0x10] sm:$0xff]
    %v1040 = vld [vmem:[%s1036 + $0x18] sm:$0xff]
    %v1041 = vld [vmem:[%s1036 + $0x20] sm:$0xff]
    %v1042 = vld [vmem:[%s1036 + $0x28] sm:$0xff]
    %v1043 = vld [vmem:[%s1036 + $0x30] sm:$0xff]
    %v1044 = vld [vmem:[%s1036 + $0x38] sm:$0xff]
    %v1045 = vld [vmem:[%s1036 + $0x40] sm:$0xff]
    %v1046 = vld [vmem:[%s1036 + $0x48] sm:$0xff]
    %v1047 = vld [vmem:[%s1036 + $0x50] sm:$0xff]
    %v1048 = vld [vmem:[%s1036 + $0x58] sm:$0xff]
    %v1049 = vld [vmem:[%s1036 + $0x60] sm:$0xff]
    %v1050 = vld [vmem:[%s1036 + $0x68] sm:$0xff]
    %v1051 = vld [vmem:[%s1036 + $0x70] sm:$0xff]
    %v1052 = vld [vmem:[%s1036 + $0x78] sm:$0xff]
    %v1053 = vld [vmem:[%s1036 + $0x80] sm:$0xff]
    %v1054 = vld [vmem:[%s1036 + $0x88] sm:$0xff]
    %v1055 = vld [vmem:[%s1036 + $0x90] sm:$0xff]
    %v1056 = vld [vmem:[%s1036 + $0x98] sm:$0xff]
    %v1057 = vld [vmem:[%s1036 + $0xa0] sm:$0xff]
    %v1058 = vld [vmem:[%s1036 + $0xa8] sm:$0xff]
    %v1059 = vld [vmem:[%s1036 + $0xb0] sm:$0xff]
    %v1060 = vld [vmem:[%s1036 + $0xb8] sm:$0xff]
    %v1061 = vld [vmem:[%s1036 + $0xc0] sm:$0xff]
    %v1062 = vld [vmem:[%s1036 + $0xc8] sm:$0xff]
    %v1063 = vld [vmem:[%s1036 + $0xd0] sm:$0xff]
    %v1064 = vld [vmem:[%s1036 + $0xd8] sm:$0xff]
    %v1065 = vld [vmem:[%s1036 + $0xe0] sm:$0xff]
    %v1066 = vld [vmem:[%s1036 + $0xe8] sm:$0xff]
    %v1067 = vld [vmem:[%s1036 + $0xf0] sm:$0xff]
    %v1068 = vld [vmem:[%s1036 + $0xf8] sm:$0xff]
    %s1069 = scalar_lea.vmem %s2, 8
    %v1070 = vld [vmem:[%s1069] sm:$0x3]
    %v1072 = vlaneseq
    %v1073 = vshrl.u32 %v1072, 7
    %v1074 = vsub.s32 0, %v1073
    %v1075 = vrot.slane %v1070, %v1074
    %v1076 = vlaneseq
    %v1077 = vshrl.u32 %v1076, 7
    %v1078 = vsub.s32 1, %v1077
    %v1079 = vrot.slane %v1070, %v1078
    %v1114 = vunpack.c.l.b16 %v1037
    %v1115 = vunpack.c.h.b16 %v1037
    %v1116 = vunpack.c.l.b16 %v1038
    %v1117 = vunpack.c.h.b16 %v1038
    %v1118 = vunpack.c.l.b16 %v1039
    %v1119 = vunpack.c.h.b16 %v1039
    %v1120 = vunpack.c.l.b16 %v1040
    %v1121 = vunpack.c.h.b16 %v1040
    %v1122 = vunpack.c.l.b16 %v1041
    %v1123 = vunpack.c.h.b16 %v1041
    %v1124 = vunpack.c.l.b16 %v1042
    %v1125 = vunpack.c.h.b16 %v1042
    %v1126 = vunpack.c.l.b16 %v1043
    %v1127 = vunpack.c.h.b16 %v1043
    %v1128 = vunpack.c.l.b16 %v1044
    %v1129 = vunpack.c.h.b16 %v1044
    %v1130 = vunpack.c.l.b16 %v1045
    %v1131 = vunpack.c.h.b16 %v1045
    %v1132 = vunpack.c.l.b16 %v1046
    %v1133 = vunpack.c.h.b16 %v1046
    %v1134 = vunpack.c.l.b16 %v1047
    %v1135 = vunpack.c.h.b16 %v1047
    %v1136 = vunpack.c.l.b16 %v1048
    %v1137 = vunpack.c.h.b16 %v1048
    %v1138 = vunpack.c.l.b16 %v1049
    %v1139 = vunpack.c.h.b16 %v1049
    %v1140 = vunpack.c.l.b16 %v1050
    %v1141 = vunpack.c.h.b16 %v1050
    %v1142 = vunpack.c.l.b16 %v1051
    %v1143 = vunpack.c.h.b16 %v1051
    %v1144 = vunpack.c.l.b16 %v1052
    %v1145 = vunpack.c.h.b16 %v1052
    %v1146 = vunpack.c.l.b16 %v1053
    %v1147 = vunpack.c.h.b16 %v1053
    %v1148 = vunpack.c.l.b16 %v1054
    %v1149 = vunpack.c.h.b16 %v1054
    %v1150 = vunpack.c.l.b16 %v1055
    %v1151 = vunpack.c.h.b16 %v1055
    %v1152 = vunpack.c.l.b16 %v1056
    %v1153 = vunpack.c.h.b16 %v1056
    %v1154 = vunpack.c.l.b16 %v1057
    %v1155 = vunpack.c.h.b16 %v1057
    %v1156 = vunpack.c.l.b16 %v1058
    %v1157 = vunpack.c.h.b16 %v1058
    %v1158 = vunpack.c.l.b16 %v1059
    %v1159 = vunpack.c.h.b16 %v1059
    %v1160 = vunpack.c.l.b16 %v1060
    %v1161 = vunpack.c.h.b16 %v1060
    %v1162 = vunpack.c.l.b16 %v1061
    %v1163 = vunpack.c.h.b16 %v1061
    %v1164 = vunpack.c.l.b16 %v1062
    %v1165 = vunpack.c.h.b16 %v1062
    %v1166 = vunpack.c.l.b16 %v1063
    %v1167 = vunpack.c.h.b16 %v1063
    %v1168 = vunpack.c.l.b16 %v1064
    %v1169 = vunpack.c.h.b16 %v1064
    %v1170 = vunpack.c.l.b16 %v1065
    %v1171 = vunpack.c.h.b16 %v1065
    %v1172 = vunpack.c.l.b16 %v1066
    %v1173 = vunpack.c.h.b16 %v1066
    %v1174 = vunpack.c.l.b16 %v1067
    %v1175 = vunpack.c.h.b16 %v1067
    %v1176 = vunpack.c.l.b16 %v1068
    %v1177 = vunpack.c.h.b16 %v1068
    %v1178 = vpack.c.b16 %v1116, %v1114
    %v1179 = vpack.c.b16 %v1117, %v1115
    %v1180 = vpack.c.b16 %v1120, %v1118
    %v1181 = vpack.c.b16 %v1121, %v1119
    %v1182 = vpack.c.b16 %v1124, %v1122
    %v1183 = vpack.c.b16 %v1125, %v1123
    %v1184 = vpack.c.b16 %v1128, %v1126
    %v1185 = vpack.c.b16 %v1129, %v1127
    %v1186 = vpack.c.b16 %v1132, %v1130
    %v1187 = vpack.c.b16 %v1133, %v1131
    %v1188 = vpack.c.b16 %v1136, %v1134
    %v1189 = vpack.c.b16 %v1137, %v1135
    %v1190 = vpack.c.b16 %v1140, %v1138
    %v1191 = vpack.c.b16 %v1141, %v1139
    %v1192 = vpack.c.b16 %v1144, %v1142
    %v1193 = vpack.c.b16 %v1145, %v1143
    %v1194 = vpack.c.b16 %v1148, %v1146
    %v1195 = vpack.c.b16 %v1149, %v1147
    %v1196 = vpack.c.b16 %v1152, %v1150
    %v1197 = vpack.c.b16 %v1153, %v1151
    %v1198 = vpack.c.b16 %v1156, %v1154
    %v1199 = vpack.c.b16 %v1157, %v1155
    %v1200 = vpack.c.b16 %v1160, %v1158
    %v1201 = vpack.c.b16 %v1161, %v1159
    %v1202 = vpack.c.b16 %v1164, %v1162
    %v1203 = vpack.c.b16 %v1165, %v1163
    %v1204 = vpack.c.b16 %v1168, %v1166
    %v1205 = vpack.c.b16 %v1169, %v1167
    %v1206 = vpack.c.b16 %v1172, %v1170
    %v1207 = vpack.c.b16 %v1173, %v1171
    %v1208 = vpack.c.b16 %v1176, %v1174
    %v1209 = vpack.c.b16 %v1177, %v1175
    %1242 = vmatprep.subr.bf16.mxu0 %v1193
    %1243 = vmatpush1.bf16.msra.mxu0 %v1192
    %1244 = vmatprep.subr.bf16.mxu0 %v1191
    %1245 = vmatpush1.bf16.msra.mxu0 %v1190
    %1246 = vmatprep.subr.bf16.mxu0 %v1189
    %1247 = vmatpush1.bf16.msra.mxu0 %v1188
    %1248 = vmatprep.subr.bf16.mxu0 %v1187
    %1249 = vmatpush1.bf16.msra.mxu0 %v1186
    %1250 = vmatprep.subr.bf16.mxu0 %v1185
    %1251 = vmatpush1.bf16.msra.mxu0 %v1184
    %1252 = vmatprep.subr.bf16.mxu0 %v1183
    %1253 = vmatpush1.bf16.msra.mxu0 %v1182
    %1254 = vmatprep.subr.bf16.mxu0 %v1181
    %1255 = vmatpush1.bf16.msra.mxu0 %v1180
    %1256 = vmatprep.subr.bf16.mxu0 %v1179
    %1257 = vmatpush1.bf16.msra.mxu0 %v1178
    %1258 = vmatprep.subr.bf16.mxu0 %v1209
    %1259 = vmatpush2.bf16.msra.mxu0 %v1208
    %1260 = vmatprep.subr.bf16.mxu0 %v1207
    %1261 = vmatpush2.bf16.msra.mxu0 %v1206
    %1262 = vmatprep.subr.bf16.mxu0 %v1205
    %1263 = vmatpush2.bf16.msra.mxu0 %v1204
    %1264 = vmatprep.subr.bf16.mxu0 %v1203
    %1265 = vmatpush2.bf16.msra.mxu0 %v1202
    %1266 = vmatprep.subr.bf16.mxu0 %v1201
    %1267 = vmatpush2.bf16.msra.mxu0 %v1200
    %1268 = vmatprep.subr.bf16.mxu0 %v1199
    %1269 = vmatpush2.bf16.msra.mxu0 %v1198
    %1270 = vmatprep.subr.bf16.mxu0 %v1197
    %1271 = vmatpush2.bf16.msra.mxu0 %v1196
    %1272 = vmatprep.subr.bf16.mxu0 %v1195
    %1273 = vmatpush2.bf16.msra.mxu0 %v1194
    %1274 = vmatprep.mubr.bf16.mxu0 %v1035
    %1275 = vmatmul.mubr.bf16.gmra.mxu0 %v1034
    %v1276 = vpop.f32.mrf.mxu0
    %v1277 = vadd.f32 %v1075, %v1276
    %v1278 = vpop.f32.mrf.mxu0
    %v1279 = vadd.f32 %v1079, %v1278
    %v1280 = vpop.f32.mrf.mxu0
    %v1281 = vadd.f32 %v1075, %v1280
    %v1282 = vpop.f32.mrf.mxu0
    %v1283 = vadd.f32 %v1079, %v1282
    %1284 = vdwg.mxu0
    %v1285 = vpack.c.bf16 %v1281, %v1277
    %v1286 = vpack.c.bf16 %v1283, %v1279
    %s1287 = scalar_lea.vmem [#allocation2], 1280
    %v1288 = vld [vmem:[%s1287] sm:$0xff]
    %v1289 = vld [vmem:[%s1287 + $0x8] sm:$0xff]
    %v1290 = vld [vmem:[%s1287 + $0x10] sm:$0xff]
    %v1291 = vld [vmem:[%s1287 + $0x18] sm:$0xff]
    %v1292 = vld [vmem:[%s1287 + $0x20] sm:$0xff]
    %v1293 = vld [vmem:[%s1287 + $0x28] sm:$0xff]
    %v1294 = vld [vmem:[%s1287 + $0x30] sm:$0xff]
    %v1295 = vld [vmem:[%s1287 + $0x38] sm:$0xff]
    %v1296 = vld [vmem:[%s1287 + $0x40] sm:$0xff]
    %v1297 = vld [vmem:[%s1287 + $0x48] sm:$0xff]
    %v1298 = vld [vmem:[%s1287 + $0x50] sm:$0xff]
    %v1299 = vld [vmem:[%s1287 + $0x58] sm:$0xff]
    %v1300 = vld [vmem:[%s1287 + $0x60] sm:$0xff]
    %v1301 = vld [vmem:[%s1287 + $0x68] sm:$0xff]
    %v1302 = vld [vmem:[%s1287 + $0x70] sm:$0xff]
    %v1303 = vld [vmem:[%s1287 + $0x78] sm:$0xff]
    %v1304 = vld [vmem:[%s1287 + $0x80] sm:$0xff]
    %v1305 = vld [vmem:[%s1287 + $0x88] sm:$0xff]
    %v1306 = vld [vmem:[%s1287 + $0x90] sm:$0xff]
    %v1307 = vld [vmem:[%s1287 + $0x98] sm:$0xff]
    %v1308 = vld [vmem:[%s1287 + $0xa0] sm:$0xff]
    %v1309 = vld [vmem:[%s1287 + $0xa8] sm:$0xff]
    %v1310 = vld [vmem:[%s1287 + $0xb0] sm:$0xff]
    %v1311 = vld [vmem:[%s1287 + $0xb8] sm:$0xff]
    %v1312 = vld [vmem:[%s1287 + $0xc0] sm:$0xff]
    %v1313 = vld [vmem:[%s1287 + $0xc8] sm:$0xff]
    %v1314 = vld [vmem:[%s1287 + $0xd0] sm:$0xff]
    %v1315 = vld [vmem:[%s1287 + $0xd8] sm:$0xff]
    %v1316 = vld [vmem:[%s1287 + $0xe0] sm:$0xff]
    %v1317 = vld [vmem:[%s1287 + $0xe8] sm:$0xff]
    %v1318 = vld [vmem:[%s1287 + $0xf0] sm:$0xff]
    %v1319 = vld [vmem:[%s1287 + $0xf8] sm:$0xff]
    %s1320 = scalar_lea.vmem %s2, 10
    %v1321 = vld [vmem:[%s1320] sm:$0x3]
    %v1323 = vlaneseq
    %v1324 = vshrl.u32 %v1323, 7
    %v1325 = vsub.s32 0, %v1324
    %v1326 = vrot.slane %v1321, %v1325
    %v1327 = vlaneseq
    %v1328 = vshrl.u32 %v1327, 7
    %v1329 = vsub.s32 1, %v1328
    %v1330 = vrot.slane %v1321, %v1329
    %v1365 = vunpack.c.l.b16 %v1288
    %v1366 = vunpack.c.h.b16 %v1288
    %v1367 = vunpack.c.l.b16 %v1289
    %v1368 = vunpack.c.h.b16 %v1289
    %v1369 = vunpack.c.l.b16 %v1290
    %v1370 = vunpack.c.h.b16 %v1290
    %v1371 = vunpack.c.l.b16 %v1291
    %v1372 = vunpack.c.h.b16 %v1291
    %v1373 = vunpack.c.l.b16 %v1292
    %v1374 = vunpack.c.h.b16 %v1292
    %v1375 = vunpack.c.l.b16 %v1293
    %v1376 = vunpack.c.h.b16 %v1293
    %v1377 = vunpack.c.l.b16 %v1294
    %v1378 = vunpack.c.h.b16 %v1294
    %v1379 = vunpack.c.l.b16 %v1295
    %v1380 = vunpack.c.h.b16 %v1295
    %v1381 = vunpack.c.l.b16 %v1296
    %v1382 = vunpack.c.h.b16 %v1296
    %v1383 = vunpack.c.l.b16 %v1297
    %v1384 = vunpack.c.h.b16 %v1297
    %v1385 = vunpack.c.l.b16 %v1298
    %v1386 = vunpack.c.h.b16 %v1298
    %v1387 = vunpack.c.l.b16 %v1299
    %v1388 = vunpack.c.h.b16 %v1299
    %v1389 = vunpack.c.l.b16 %v1300
    %v1390 = vunpack.c.h.b16 %v1300
    %v1391 = vunpack.c.l.b16 %v1301
    %v1392 = vunpack.c.h.b16 %v1301
    %v1393 = vunpack.c.l.b16 %v1302
    %v1394 = vunpack.c.h.b16 %v1302
    %v1395 = vunpack.c.l.b16 %v1303
    %v1396 = vunpack.c.h.b16 %v1303
    %v1397 = vunpack.c.l.b16 %v1304
    %v1398 = vunpack.c.h.b16 %v1304
    %v1399 = vunpack.c.l.b16 %v1305
    %v1400 = vunpack.c.h.b16 %v1305
    %v1401 = vunpack.c.l.b16 %v1306
    %v1402 = vunpack.c.h.b16 %v1306
    %v1403 = vunpack.c.l.b16 %v1307
    %v1404 = vunpack.c.h.b16 %v1307
    %v1405 = vunpack.c.l.b16 %v1308
    %v1406 = vunpack.c.h.b16 %v1308
    %v1407 = vunpack.c.l.b16 %v1309
    %v1408 = vunpack.c.h.b16 %v1309
    %v1409 = vunpack.c.l.b16 %v1310
    %v1410 = vunpack.c.h.b16 %v1310
    %v1411 = vunpack.c.l.b16 %v1311
    %v1412 = vunpack.c.h.b16 %v1311
    %v1413 = vunpack.c.l.b16 %v1312
    %v1414 = vunpack.c.h.b16 %v1312
    %v1415 = vunpack.c.l.b16 %v1313
    %v1416 = vunpack.c.h.b16 %v1313
    %v1417 = vunpack.c.l.b16 %v1314
    %v1418 = vunpack.c.h.b16 %v1314
    %v1419 = vunpack.c.l.b16 %v1315
    %v1420 = vunpack.c.h.b16 %v1315
    %v1421 = vunpack.c.l.b16 %v1316
    %v1422 = vunpack.c.h.b16 %v1316
    %v1423 = vunpack.c.l.b16 %v1317
    %v1424 = vunpack.c.h.b16 %v1317
    %v1425 = vunpack.c.l.b16 %v1318
    %v1426 = vunpack.c.h.b16 %v1318
    %v1427 = vunpack.c.l.b16 %v1319
    %v1428 = vunpack.c.h.b16 %v1319
    %v1429 = vpack.c.b16 %v1367, %v1365
    %v1430 = vpack.c.b16 %v1368, %v1366
    %v1431 = vpack.c.b16 %v1371, %v1369
    %v1432 = vpack.c.b16 %v1372, %v1370
    %v1433 = vpack.c.b16 %v1375, %v1373
    %v1434 = vpack.c.b16 %v1376, %v1374
    %v1435 = vpack.c.b16 %v1379, %v1377
    %v1436 = vpack.c.b16 %v1380, %v1378
    %v1437 = vpack.c.b16 %v1383, %v1381
    %v1438 = vpack.c.b16 %v1384, %v1382
    %v1439 = vpack.c.b16 %v1387, %v1385
    %v1440 = vpack.c.b16 %v1388, %v1386
    %v1441 = vpack.c.b16 %v1391, %v1389
    %v1442 = vpack.c.b16 %v1392, %v1390
    %v1443 = vpack.c.b16 %v1395, %v1393
    %v1444 = vpack.c.b16 %v1396, %v1394
    %v1445 = vpack.c.b16 %v1399, %v1397
    %v1446 = vpack.c.b16 %v1400, %v1398
    %v1447 = vpack.c.b16 %v1403, %v1401
    %v1448 = vpack.c.b16 %v1404, %v1402
    %v1449 = vpack.c.b16 %v1407, %v1405
    %v1450 = vpack.c.b16 %v1408, %v1406
    %v1451 = vpack.c.b16 %v1411, %v1409
    %v1452 = vpack.c.b16 %v1412, %v1410
    %v1453 = vpack.c.b16 %v1415, %v1413
    %v1454 = vpack.c.b16 %v1416, %v1414
    %v1455 = vpack.c.b16 %v1419, %v1417
    %v1456 = vpack.c.b16 %v1420, %v1418
    %v1457 = vpack.c.b16 %v1423, %v1421
    %v1458 = vpack.c.b16 %v1424, %v1422
    %v1459 = vpack.c.b16 %v1427, %v1425
    %v1460 = vpack.c.b16 %v1428, %v1426
    %1493 = vmatprep.subr.bf16.mxu0 %v1444
    %1494 = vmatpush1.bf16.msra.mxu0 %v1443
    %1495 = vmatprep.subr.bf16.mxu0 %v1442
    %1496 = vmatpush1.bf16.msra.mxu0 %v1441
    %1497 = vmatprep.subr.bf16.mxu0 %v1440
    %1498 = vmatpush1.bf16.msra.mxu0 %v1439
    %1499 = vmatprep.subr.bf16.mxu0 %v1438
    %1500 = vmatpush1.bf16.msra.mxu0 %v1437
    %1501 = vmatprep.subr.bf16.mxu0 %v1436
    %1502 = vmatpush1.bf16.msra.mxu0 %v1435
    %1503 = vmatprep.subr.bf16.mxu0 %v1434
    %1504 = vmatpush1.bf16.msra.mxu0 %v1433
    %1505 = vmatprep.subr.bf16.mxu0 %v1432
    %1506 = vmatpush1.bf16.msra.mxu0 %v1431
    %1507 = vmatprep.subr.bf16.mxu0 %v1430
    %1508 = vmatpush1.bf16.msra.mxu0 %v1429
    %1509 = vmatprep.subr.bf16.mxu0 %v1460
    %1510 = vmatpush2.bf16.msra.mxu0 %v1459
    %1511 = vmatprep.subr.bf16.mxu0 %v1458
    %1512 = vmatpush2.bf16.msra.mxu0 %v1457
    %1513 = vmatprep.subr.bf16.mxu0 %v1456
    %1514 = vmatpush2.bf16.msra.mxu0 %v1455
    %1515 = vmatprep.subr.bf16.mxu0 %v1454
    %1516 = vmatpush2.bf16.msra.mxu0 %v1453
    %1517 = vmatprep.subr.bf16.mxu0 %v1452
    %1518 = vmatpush2.bf16.msra.mxu0 %v1451
    %1519 = vmatprep.subr.bf16.mxu0 %v1450
    %1520 = vmatpush2.bf16.msra.mxu0 %v1449
    %1521 = vmatprep.subr.bf16.mxu0 %v1448
    %1522 = vmatpush2.bf16.msra.mxu0 %v1447
    %1523 = vmatprep.subr.bf16.mxu0 %v1446
    %1524 = vmatpush2.bf16.msra.mxu0 %v1445
    %1525 = vmatprep.mubr.bf16.mxu0 %v1286
    %1526 = vmatmul.mubr.bf16.gmra.mxu0 %v1285
    %v1527 = vpop.f32.mrf.mxu0
    %v1528 = vadd.f32 %v1326, %v1527
    %v1529 = vpop.f32.mrf.mxu0
    %v1530 = vadd.f32 %v1330, %v1529
    %v1531 = vpop.f32.mrf.mxu0
    %v1532 = vadd.f32 %v1326, %v1531
    %v1533 = vpop.f32.mrf.mxu0
    %v1534 = vadd.f32 %v1330, %v1533
    %1535 = vdwg.mxu0
    %v1536 = vpack.c.bf16 %v1532, %v1528
    %v1537 = vpack.c.bf16 %v1534, %v1530
    %s1538 = scalar_lea.vmem [#allocation2], 1536
    %v1539 = vld [vmem:[%s1538] sm:$0xff]
    %v1540 = vld [vmem:[%s1538 + $0x8] sm:$0xff]
    %v1541 = vld [vmem:[%s1538 + $0x10] sm:$0xff]
    %v1542 = vld [vmem:[%s1538 + $0x18] sm:$0xff]
    %v1543 = vld [vmem:[%s1538 + $0x20] sm:$0xff]
    %v1544 = vld [vmem:[%s1538 + $0x28] sm:$0xff]
    %v1545 = vld [vmem:[%s1538 + $0x30] sm:$0xff]
    %v1546 = vld [vmem:[%s1538 + $0x38] sm:$0xff]
    %v1547 = vld [vmem:[%s1538 + $0x40] sm:$0xff]
    %v1548 = vld [vmem:[%s1538 + $0x48] sm:$0xff]
    %v1549 = vld [vmem:[%s1538 + $0x50] sm:$0xff]
    %v1550 = vld [vmem:[%s1538 + $0x58] sm:$0xff]
    %v1551 = vld [vmem:[%s1538 + $0x60] sm:$0xff]
    %v1552 = vld [vmem:[%s1538 + $0x68] sm:$0xff]
    %v1553 = vld [vmem:[%s1538 + $0x70] sm:$0xff]
    %v1554 = vld [vmem:[%s1538 + $0x78] sm:$0xff]
    %v1555 = vld [vmem:[%s1538 + $0x80] sm:$0xff]
    %v1556 = vld [vmem:[%s1538 + $0x88] sm:$0xff]
    %v1557 = vld [vmem:[%s1538 + $0x90] sm:$0xff]
    %v1558 = vld [vmem:[%s1538 + $0x98] sm:$0xff]
    %v1559 = vld [vmem:[%s1538 + $0xa0] sm:$0xff]
    %v1560 = vld [vmem:[%s1538 + $0xa8] sm:$0xff]
    %v1561 = vld [vmem:[%s1538 + $0xb0] sm:$0xff]
    %v1562 = vld [vmem:[%s1538 + $0xb8] sm:$0xff]
    %v1563 = vld [vmem:[%s1538 + $0xc0] sm:$0xff]
    %v1564 = vld [vmem:[%s1538 + $0xc8] sm:$0xff]
    %v1565 = vld [vmem:[%s1538 + $0xd0] sm:$0xff]
    %v1566 = vld [vmem:[%s1538 + $0xd8] sm:$0xff]
    %v1567 = vld [vmem:[%s1538 + $0xe0] sm:$0xff]
    %v1568 = vld [vmem:[%s1538 + $0xe8] sm:$0xff]
    %v1569 = vld [vmem:[%s1538 + $0xf0] sm:$0xff]
    %v1570 = vld [vmem:[%s1538 + $0xf8] sm:$0xff]
    %s1571 = scalar_lea.vmem %s2, 12
    %v1572 = vld [vmem:[%s1571] sm:$0x3]
    %v1574 = vlaneseq
    %v1575 = vshrl.u32 %v1574, 7
    %v1576 = vsub.s32 0, %v1575
    %v1577 = vrot.slane %v1572, %v1576
    %v1578 = vlaneseq
    %v1579 = vshrl.u32 %v1578, 7
    %v1580 = vsub.s32 1, %v1579
    %v1581 = vrot.slane %v1572, %v1580
    %v1616 = vunpack.c.l.b16 %v1539
    %v1617 = vunpack.c.h.b16 %v1539
    %v1618 = vunpack.c.l.b16 %v1540
    %v1619 = vunpack.c.h.b16 %v1540
    %v1620 = vunpack.c.l.b16 %v1541
    %v1621 = vunpack.c.h.b16 %v1541
    %v1622 = vunpack.c.l.b16 %v1542
    %v1623 = vunpack.c.h.b16 %v1542
    %v1624 = vunpack.c.l.b16 %v1543
    %v1625 = vunpack.c.h.b16 %v1543
    %v1626 = vunpack.c.l.b16 %v1544
    %v1627 = vunpack.c.h.b16 %v1544
    %v1628 = vunpack.c.l.b16 %v1545
    %v1629 = vunpack.c.h.b16 %v1545
    %v1630 = vunpack.c.l.b16 %v1546
    %v1631 = vunpack.c.h.b16 %v1546
    %v1632 = vunpack.c.l.b16 %v1547
    %v1633 = vunpack.c.h.b16 %v1547
    %v1634 = vunpack.c.l.b16 %v1548
    %v1635 = vunpack.c.h.b16 %v1548
    %v1636 = vunpack.c.l.b16 %v1549
    %v1637 = vunpack.c.h.b16 %v1549
    %v1638 = vunpack.c.l.b16 %v1550
    %v1639 = vunpack.c.h.b16 %v1550
    %v1640 = vunpack.c.l.b16 %v1551
    %v1641 = vunpack.c.h.b16 %v1551
    %v1642 = vunpack.c.l.b16 %v1552
    %v1643 = vunpack.c.h.b16 %v1552
    %v1644 = vunpack.c.l.b16 %v1553
    %v1645 = vunpack.c.h.b16 %v1553
    %v1646 = vunpack.c.l.b16 %v1554
    %v1647 = vunpack.c.h.b16 %v1554
    %v1648 = vunpack.c.l.b16 %v1555
    %v1649 = vunpack.c.h.b16 %v1555
    %v1650 = vunpack.c.l.b16 %v1556
    %v1651 = vunpack.c.h.b16 %v1556
    %v1652 = vunpack.c.l.b16 %v1557
    %v1653 = vunpack.c.h.b16 %v1557
    %v1654 = vunpack.c.l.b16 %v1558
    %v1655 = vunpack.c.h.b16 %v1558
    %v1656 = vunpack.c.l.b16 %v1559
    %v1657 = vunpack.c.h.b16 %v1559
    %v1658 = vunpack.c.l.b16 %v1560
    %v1659 = vunpack.c.h.b16 %v1560
    %v1660 = vunpack.c.l.b16 %v1561
    %v1661 = vunpack.c.h.b16 %v1561
    %v1662 = vunpack.c.l.b16 %v1562
    %v1663 = vunpack.c.h.b16 %v1562
    %v1664 = vunpack.c.l.b16 %v1563
    %v1665 = vunpack.c.h.b16 %v1563
    %v1666 = vunpack.c.l.b16 %v1564
    %v1667 = vunpack.c.h.b16 %v1564
    %v1668 = vunpack.c.l.b16 %v1565
    %v1669 = vunpack.c.h.b16 %v1565
    %v1670 = vunpack.c.l.b16 %v1566
    %v1671 = vunpack.c.h.b16 %v1566
    %v1672 = vunpack.c.l.b16 %v1567
    %v1673 = vunpack.c.h.b16 %v1567
    %v1674 = vunpack.c.l.b16 %v1568
    %v1675 = vunpack.c.h.b16 %v1568
    %v1676 = vunpack.c.l.b16 %v1569
    %v1677 = vunpack.c.h.b16 %v1569
    %v1678 = vunpack.c.l.b16 %v1570
    %v1679 = vunpack.c.h.b16 %v1570
    %v1680 = vpack.c.b16 %v1618, %v1616
    %v1681 = vpack.c.b16 %v1619, %v1617
    %v1682 = vpack.c.b16 %v1622, %v1620
    %v1683 = vpack.c.b16 %v1623, %v1621
    %v1684 = vpack.c.b16 %v1626, %v1624
    %v1685 = vpack.c.b16 %v1627, %v1625
    %v1686 = vpack.c.b16 %v1630, %v1628
    %v1687 = vpack.c.b16 %v1631, %v1629
    %v1688 = vpack.c.b16 %v1634, %v1632
    %v1689 = vpack.c.b16 %v1635, %v1633
    %v1690 = vpack.c.b16 %v1638, %v1636
    %v1691 = vpack.c.b16 %v1639, %v1637
    %v1692 = vpack.c.b16 %v1642, %v1640
    %v1693 = vpack.c.b16 %v1643, %v1641
    %v1694 = vpack.c.b16 %v1646, %v1644
    %v1695 = vpack.c.b16 %v1647, %v1645
    %v1696 = vpack.c.b16 %v1650, %v1648
    %v1697 = vpack.c.b16 %v1651, %v1649
    %v1698 = vpack.c.b16 %v1654, %v1652
    %v1699 = vpack.c.b16 %v1655, %v1653
    %v1700 = vpack.c.b16 %v1658, %v1656
    %v1701 = vpack.c.b16 %v1659, %v1657
    %v1702 = vpack.c.b16 %v1662, %v1660
    %v1703 = vpack.c.b16 %v1663, %v1661
    %v1704 = vpack.c.b16 %v1666, %v1664
    %v1705 = vpack.c.b16 %v1667, %v1665
    %v1706 = vpack.c.b16 %v1670, %v1668
    %v1707 = vpack.c.b16 %v1671, %v1669
    %v1708 = vpack.c.b16 %v1674, %v1672
    %v1709 = vpack.c.b16 %v1675, %v1673
    %v1710 = vpack.c.b16 %v1678, %v1676
    %v1711 = vpack.c.b16 %v1679, %v1677
    %1744 = vmatprep.subr.bf16.mxu0 %v1695
    %1745 = vmatpush1.bf16.msra.mxu0 %v1694
    %1746 = vmatprep.subr.bf16.mxu0 %v1693
    %1747 = vmatpush1.bf16.msra.mxu0 %v1692
    %1748 = vmatprep.subr.bf16.mxu0 %v1691
    %1749 = vmatpush1.bf16.msra.mxu0 %v1690
    %1750 = vmatprep.subr.bf16.mxu0 %v1689
    %1751 = vmatpush1.bf16.msra.mxu0 %v1688
    %1752 = vmatprep.subr.bf16.mxu0 %v1687
    %1753 = vmatpush1.bf16.msra.mxu0 %v1686
    %1754 = vmatprep.subr.bf16.mxu0 %v1685
    %1755 = vmatpush1.bf16.msra.mxu0 %v1684
    %1756 = vmatprep.subr.bf16.mxu0 %v1683
    %1757 = vmatpush1.bf16.msra.mxu0 %v1682
    %1758 = vmatprep.subr.bf16.mxu0 %v1681
    %1759 = vmatpush1.bf16.msra.mxu0 %v1680
    %1760 = vmatprep.subr.bf16.mxu0 %v1711
    %1761 = vmatpush2.bf16.msra.mxu0 %v1710
    %1762 = vmatprep.subr.bf16.mxu0 %v1709
    %1763 = vmatpush2.bf16.msra.mxu0 %v1708
    %1764 = vmatprep.subr.bf16.mxu0 %v1707
    %1765 = vmatpush2.bf16.msra.mxu0 %v1706
    %1766 = vmatprep.subr.bf16.mxu0 %v1705
    %1767 = vmatpush2.bf16.msra.mxu0 %v1704
    %1768 = vmatprep.subr.bf16.mxu0 %v1703
    %1769 = vmatpush2.bf16.msra.mxu0 %v1702
    %1770 = vmatprep.subr.bf16.mxu0 %v1701
    %1771 = vmatpush2.bf16.msra.mxu0 %v1700
    %1772 = vmatprep.subr.bf16.mxu0 %v1699
    %1773 = vmatpush2.bf16.msra.mxu0 %v1698
    %1774 = vmatprep.subr.bf16.mxu0 %v1697
    %1775 = vmatpush2.bf16.msra.mxu0 %v1696
    %1776 = vmatprep.mubr.bf16.mxu0 %v1537
    %1777 = vmatmul.mubr.bf16.gmra.mxu0 %v1536
    %v1778 = vpop.f32.mrf.mxu0
    %v1779 = vadd.f32 %v1577, %v1778
    %v1780 = vpop.f32.mrf.mxu0
    %v1781 = vadd.f32 %v1581, %v1780
    %v1782 = vpop.f32.mrf.mxu0
    %v1783 = vadd.f32 %v1577, %v1782
    %v1784 = vpop.f32.mrf.mxu0
    %v1785 = vadd.f32 %v1581, %v1784
    %1786 = vdwg.mxu0
    %v1787 = vpack.c.bf16 %v1783, %v1779
    %v1788 = vpack.c.bf16 %v1785, %v1781
    %s1789 = scalar_lea.vmem [#allocation2], 1792
    %v1790 = vld [vmem:[%s1789] sm:$0xff]
    %v1791 = vld [vmem:[%s1789 + $0x8] sm:$0xff]
    %v1792 = vld [vmem:[%s1789 + $0x10] sm:$0xff]
    %v1793 = vld [vmem:[%s1789 + $0x18] sm:$0xff]
    %v1794 = vld [vmem:[%s1789 + $0x20] sm:$0xff]
    %v1795 = vld [vmem:[%s1789 + $0x28] sm:$0xff]
    %v1796 = vld [vmem:[%s1789 + $0x30] sm:$0xff]
    %v1797 = vld [vmem:[%s1789 + $0x38] sm:$0xff]
    %v1798 = vld [vmem:[%s1789 + $0x40] sm:$0xff]
    %v1799 = vld [vmem:[%s1789 + $0x48] sm:$0xff]
    %v1800 = vld [vmem:[%s1789 + $0x50] sm:$0xff]
    %v1801 = vld [vmem:[%s1789 + $0x58] sm:$0xff]
    %v1802 = vld [vmem:[%s1789 + $0x60] sm:$0xff]
    %v1803 = vld [vmem:[%s1789 + $0x68] sm:$0xff]
    %v1804 = vld [vmem:[%s1789 + $0x70] sm:$0xff]
    %v1805 = vld [vmem:[%s1789 + $0x78] sm:$0xff]
    %v1806 = vld [vmem:[%s1789 + $0x80] sm:$0xff]
    %v1807 = vld [vmem:[%s1789 + $0x88] sm:$0xff]
    %v1808 = vld [vmem:[%s1789 + $0x90] sm:$0xff]
    %v1809 = vld [vmem:[%s1789 + $0x98] sm:$0xff]
    %v1810 = vld [vmem:[%s1789 + $0xa0] sm:$0xff]
    %v1811 = vld [vmem:[%s1789 + $0xa8] sm:$0xff]
    %v1812 = vld [vmem:[%s1789 + $0xb0] sm:$0xff]
    %v1813 = vld [vmem:[%s1789 + $0xb8] sm:$0xff]
    %v1814 = vld [vmem:[%s1789 + $0xc0] sm:$0xff]
    %v1815 = vld [vmem:[%s1789 + $0xc8] sm:$0xff]
    %v1816 = vld [vmem:[%s1789 + $0xd0] sm:$0xff]
    %v1817 = vld [vmem:[%s1789 + $0xd8] sm:$0xff]
    %v1818 = vld [vmem:[%s1789 + $0xe0] sm:$0xff]
    %v1819 = vld [vmem:[%s1789 + $0xe8] sm:$0xff]
    %v1820 = vld [vmem:[%s1789 + $0xf0] sm:$0xff]
    %v1821 = vld [vmem:[%s1789 + $0xf8] sm:$0xff]
    %s1822 = scalar_lea.vmem %s2, 14
    %v1823 = vld [vmem:[%s1822] sm:$0x3]
    %v1825 = vlaneseq
    %v1826 = vshrl.u32 %v1825, 7
    %v1827 = vsub.s32 0, %v1826
    %v1828 = vrot.slane %v1823, %v1827
    %v1829 = vlaneseq
    %v1830 = vshrl.u32 %v1829, 7
    %v1831 = vsub.s32 1, %v1830
    %v1832 = vrot.slane %v1823, %v1831
    %v1867 = vunpack.c.l.b16 %v1790
    %v1868 = vunpack.c.h.b16 %v1790
    %v1869 = vunpack.c.l.b16 %v1791
    %v1870 = vunpack.c.h.b16 %v1791
    %v1871 = vunpack.c.l.b16 %v1792
    %v1872 = vunpack.c.h.b16 %v1792
    %v1873 = vunpack.c.l.b16 %v1793
    %v1874 = vunpack.c.h.b16 %v1793
    %v1875 = vunpack.c.l.b16 %v1794
    %v1876 = vunpack.c.h.b16 %v1794
    %v1877 = vunpack.c.l.b16 %v1795
    %v1878 = vunpack.c.h.b16 %v1795
    %v1879 = vunpack.c.l.b16 %v1796
    %v1880 = vunpack.c.h.b16 %v1796
    %v1881 = vunpack.c.l.b16 %v1797
    %v1882 = vunpack.c.h.b16 %v1797
    %v1883 = vunpack.c.l.b16 %v1798
    %v1884 = vunpack.c.h.b16 %v1798
    %v1885 = vunpack.c.l.b16 %v1799
    %v1886 = vunpack.c.h.b16 %v1799
    %v1887 = vunpack.c.l.b16 %v1800
    %v1888 = vunpack.c.h.b16 %v1800
    %v1889 = vunpack.c.l.b16 %v1801
    %v1890 = vunpack.c.h.b16 %v1801
    %v1891 = vunpack.c.l.b16 %v1802
    %v1892 = vunpack.c.h.b16 %v1802
    %v1893 = vunpack.c.l.b16 %v1803
    %v1894 = vunpack.c.h.b16 %v1803
    %v1895 = vunpack.c.l.b16 %v1804
    %v1896 = vunpack.c.h.b16 %v1804
    %v1897 = vunpack.c.l.b16 %v1805
    %v1898 = vunpack.c.h.b16 %v1805
    %v1899 = vunpack.c.l.b16 %v1806
    %v1900 = vunpack.c.h.b16 %v1806
    %v1901 = vunpack.c.l.b16 %v1807
    %v1902 = vunpack.c.h.b16 %v1807
    %v1903 = vunpack.c.l.b16 %v1808
    %v1904 = vunpack.c.h.b16 %v1808
    %v1905 = vunpack.c.l.b16 %v1809
    %v1906 = vunpack.c.h.b16 %v1809
    %v1907 = vunpack.c.l.b16 %v1810
    %v1908 = vunpack.c.h.b16 %v1810
    %v1909 = vunpack.c.l.b16 %v1811
    %v1910 = vunpack.c.h.b16 %v1811
    %v1911 = vunpack.c.l.b16 %v1812
    %v1912 = vunpack.c.h.b16 %v1812
    %v1913 = vunpack.c.l.b16 %v1813
    %v1914 = vunpack.c.h.b16 %v1813
    %v1915 = vunpack.c.l.b16 %v1814
    %v1916 = vunpack.c.h.b16 %v1814
    %v1917 = vunpack.c.l.b16 %v1815
    %v1918 = vunpack.c.h.b16 %v1815
    %v1919 = vunpack.c.l.b16 %v1816
    %v1920 = vunpack.c.h.b16 %v1816
    %v1921 = vunpack.c.l.b16 %v1817
    %v1922 = vunpack.c.h.b16 %v1817
    %v1923 = vunpack.c.l.b16 %v1818
    %v1924 = vunpack.c.h.b16 %v1818
    %v1925 = vunpack.c.l.b16 %v1819
    %v1926 = vunpack.c.h.b16 %v1819
    %v1927 = vunpack.c.l.b16 %v1820
    %v1928 = vunpack.c.h.b16 %v1820
    %v1929 = vunpack.c.l.b16 %v1821
    %v1930 = vunpack.c.h.b16 %v1821
    %v1931 = vpack.c.b16 %v1869, %v1867
    %v1932 = vpack.c.b16 %v1870, %v1868
    %v1933 = vpack.c.b16 %v1873, %v1871
    %v1934 = vpack.c.b16 %v1874, %v1872
    %v1935 = vpack.c.b16 %v1877, %v1875
    %v1936 = vpack.c.b16 %v1878, %v1876
    %v1937 = vpack.c.b16 %v1881, %v1879
    %v1938 = vpack.c.b16 %v1882, %v1880
    %v1939 = vpack.c.b16 %v1885, %v1883
    %v1940 = vpack.c.b16 %v1886, %v1884
    %v1941 = vpack.c.b16 %v1889, %v1887
    %v1942 = vpack.c.b16 %v1890, %v1888
    %v1943 = vpack.c.b16 %v1893, %v1891
    %v1944 = vpack.c.b16 %v1894, %v1892
    %v1945 = vpack.c.b16 %v1897, %v1895
    %v1946 = vpack.c.b16 %v1898, %v1896
    %v1947 = vpack.c.b16 %v1901, %v1899
    %v1948 = vpack.c.b16 %v1902, %v1900
    %v1949 = vpack.c.b16 %v1905, %v1903
    %v1950 = vpack.c.b16 %v1906, %v1904
    %v1951 = vpack.c.b16 %v1909, %v1907
    %v1952 = vpack.c.b16 %v1910, %v1908
    %v1953 = vpack.c.b16 %v1913, %v1911
    %v1954 = vpack.c.b16 %v1914, %v1912
    %v1955 = vpack.c.b16 %v1917, %v1915
    %v1956 = vpack.c.b16 %v1918, %v1916
    %v1957 = vpack.c.b16 %v1921, %v1919
    %v1958 = vpack.c.b16 %v1922, %v1920
    %v1959 = vpack.c.b16 %v1925, %v1923
    %v1960 = vpack.c.b16 %v1926, %v1924
    %v1961 = vpack.c.b16 %v1929, %v1927
    %v1962 = vpack.c.b16 %v1930, %v1928
    %1995 = vmatprep.subr.bf16.mxu0 %v1946
    %1996 = vmatpush1.bf16.msra.mxu0 %v1945
    %1997 = vmatprep.subr.bf16.mxu0 %v1944
    %1998 = vmatpush1.bf16.msra.mxu0 %v1943
    %1999 = vmatprep.subr.bf16.mxu0 %v1942
    %2000 = vmatpush1.bf16.msra.mxu0 %v1941
    %2001 = vmatprep.subr.bf16.mxu0 %v1940
    %2002 = vmatpush1.bf16.msra.mxu0 %v1939
    %2003 = vmatprep.subr.bf16.mxu0 %v1938
    %2004 = vmatpush1.bf16.msra.mxu0 %v1937
    %2005 = vmatprep.subr.bf16.mxu0 %v1936
    %2006 = vmatpush1.bf16.msra.mxu0 %v1935
    %2007 = vmatprep.subr.bf16.mxu0 %v1934
    %2008 = vmatpush1.bf16.msra.mxu0 %v1933
    %2009 = vmatprep.subr.bf16.mxu0 %v1932
    %2010 = vmatpush1.bf16.msra.mxu0 %v1931
    %2011 = vmatprep.subr.bf16.mxu0 %v1962
    %2012 = vmatpush2.bf16.msra.mxu0 %v1961
    %2013 = vmatprep.subr.bf16.mxu0 %v1960
    %2014 = vmatpush2.bf16.msra.mxu0 %v1959
    %2015 = vmatprep.subr.bf16.mxu0 %v1958
    %2016 = vmatpush2.bf16.msra.mxu0 %v1957
    %2017 = vmatprep.subr.bf16.mxu0 %v1956
    %2018 = vmatpush2.bf16.msra.mxu0 %v1955
    %2019 = vmatprep.subr.bf16.mxu0 %v1954
    %2020 = vmatpush2.bf16.msra.mxu0 %v1953
    %2021 = vmatprep.subr.bf16.mxu0 %v1952
    %2022 = vmatpush2.bf16.msra.mxu0 %v1951
    %2023 = vmatprep.subr.bf16.mxu0 %v1950
    %2024 = vmatpush2.bf16.msra.mxu0 %v1949
    %2025 = vmatprep.subr.bf16.mxu0 %v1948
    %2026 = vmatpush2.bf16.msra.mxu0 %v1947
    %2027 = vmatprep.mubr.bf16.mxu0 %v1788
    %2028 = vmatmul.mubr.bf16.gmra.mxu0 %v1787
    %v2029 = vpop.f32.mrf.mxu0
    %v2030 = vadd.f32 %v1828, %v2029
    %v2031 = vpop.f32.mrf.mxu0
    %v2032 = vadd.f32 %v1832, %v2031
    %v2033 = vpop.f32.mrf.mxu0
    %v2034 = vadd.f32 %v1828, %v2033
    %v2035 = vpop.f32.mrf.mxu0
    %v2036 = vadd.f32 %v1832, %v2035
    %2037 = vdwg.mxu0
    %2038 = vst [vmem:[%s3] sm:$0xff] %v2030
    %2039 = vst [vmem:[%s3 + $0x8] sm:$0xff] %v2032
    %2040 = vst [vmem:[%s3 + $0x10] sm:$0xff] %v2034
    %2041 = vst [vmem:[%s3 + $0x18] sm:$0xff] %v2036
    // Predicated region
    $region18: #{mapping_forward_prepared.1} parent=1 // pred_check
      _
    $region19: #{mapping_forward_prepared.1} parent=1 // pred_check_branch
      %2043 = sbr.rel (0) target = $region21
    $region20: #{mapping_forward_prepared.1} parent=1 // pred_region
      _
    $region21: #{mapping_forward_prepared.1} parent=1 // pred_fallthru
      _
    // Predicated region
    $region22: #{mapping_forward_prepared.1} parent=1 // pred_check
      _
    $region23: #{mapping_forward_prepared.1} parent=1 // pred_check_branch
      %2045 = sbr.rel (0) target = $region25
    $region24: #{mapping_forward_prepared.1} parent=1 // pred_region
      _
    $region25: #{mapping_forward_prepared.1} parent=1 // pred_fallthru
      _
    %2046 = vsyncpa [#allocation3], 1

</llo_original>
